<compile_context>
chip_gen: v6e
topology: v6e:2x2x1
jax: 0.10.0
libtpu: 0.0.40
codegen_flags: <defaults>
</compile_context>

<pallas_src>
import functools

import jax
import jax.numpy as jnp
from jax.experimental import pallas as pl
from jax.experimental.pallas import tpu as pltpu


_COMPUTE_DTYPE = jnp.bfloat16  # MXU-native input dtype on v5e/v6e/v7x


def _swiglu_kernel(x_ref, w1_ref, b1_ref, w2_ref, b2_ref, w3_ref, b3_ref,
                   o_ref, *scratch):
    """One (row-tile i, hidden-column-tile j) step of fused SwiGLU.

    The w3 contraction over j accumulates into a f32 VMEM scratch (when the
    output dtype is not f32) or directly into the resident f32 output block,
    with b3 folded into the j == 0 init so it is added exactly once.
    """
    acc_ref = scratch[0] if scratch else o_ref
    j = pl.program_id(1)

    @pl.when(j == 0)
    def _init():
        acc_ref[...] = jnp.zeros(acc_ref.shape, jnp.float32) + b3_ref[...]

    x = x_ref[...]                                              # (tm, inner) bf16
    # w1 / w2 column slices -> f32 accumulation on the MXU, biases added in f32.
    x1 = jnp.dot(x, w1_ref[...], preferred_element_type=jnp.float32) + b1_ref[...]
    x2 = jnp.dot(x, w2_ref[...], preferred_element_type=jnp.float32) + b2_ref[...]
    # SiLU(x1) * x2 in f32 (VPU/EUP); cast only for the MXU input of w3.
    hidden = (x1 * jax.nn.sigmoid(x1)) * x2                     # (tm, tn) f32
    acc_ref[...] += jnp.dot(hidden.astype(w3_ref.dtype), w3_ref[...],
                            preferred_element_type=jnp.float32)

    if scratch:                                    # trace-time branch
        @pl.when(j == pl.num_programs(1) - 1)
        def _finalize():
            o_ref[...] = acc_ref[...].astype(o_ref.dtype)


def _round_up(a, b):
    return (a + b - 1) // b * b


def _tpu_generation_info():
    """Best-effort (vmem_capacity_bytes, multi_tensorcore) query."""
    cap = None
    multi_tc = None
    try:
        info = pltpu.get_tpu_info()
        cap = int(getattr(info, "vmem_capacity_bytes", 0)) or None
    except Exception:
        pass
    try:
        kind = jax.devices()[0].device_kind.lower()
        if ("v5e" in kind) or ("v5 lite" in kind) or ("v6" in kind):
            multi_tc = False                       # 1 TC/chip, 128 MiB VMEM
            cap = cap or 128 * 1024 * 1024
        elif "v7" in kind:
            multi_tc = True                        # 2 TC/chip, 64 MiB VMEM/TC
            cap = cap or 64 * 1024 * 1024
    except Exception:
        pass
    if cap is None:
        cap = 64 * 1024 * 1024                     # conservative fallback (v7x)
    if multi_tc is None:
        multi_tc = cap <= 96 * 1024 * 1024         # 64 MiB/TC parts have 2 TCs
    return cap, multi_tc


def _vmem_estimate(tm, tn, inner, out_bytes, use_scratch):
    """Rough VMEM footprint for one grid step with double-buffered pipelining."""
    wb = 2   # bf16 kernel inputs
    buf = 2  # double buffering
    est = buf * (tm * inner * wb               # x row tile
                 + 2 * inner * tn * wb         # w1, w2 column slices
                 + tn * inner * wb             # w3 row slice
                 + 8 * (2 * tn + inner) * 4    # sublane-padded bias slices
                 + tm * inner * out_bytes)     # output row tile
    if use_scratch:
        est += tm * inner * 4                  # f32 accumulator scratch
    return est


def _choose_tiles(M, inner, out_bytes, use_scratch, vmem_budget, multi_tc):
    """Largest row tile (main lever: amortizes weight streaming), then largest
    hidden-column tile, that fit the per-generation VMEM budget."""
    tn_candidates = [t for t in (512, 256, 128) if inner % t == 0] or [inner]
    tm_cap = _round_up(max(M, 1), 16)
    if multi_tc and M > 16:
        # Keep >= 2 row tiles so both TensorCores on a 2-TC chip get work.
        tm_cap = min(tm_cap, _round_up((M + 1) // 2, 16))
    tm_candidates = sorted(
        {c for c in (1024, 768, 512, 384, 256, 192, 128, 96, 64, 48, 32, 16,
                     tm_cap) if c <= tm_cap},
        reverse=True)
    for tm in tm_candidates:
        for tn in tn_candidates:
            if _vmem_estimate(tm, tn, inner, out_bytes, use_scratch) <= vmem_budget:
                return tm, tn
    # TODO(synk): for extreme `inner`, also tile the output columns instead of
    # keeping full-width (tm, inner) residents.
    return 16, tn_candidates[-1]


@functools.partial(jax.jit, static_argnames=("tm", "tn"))
def swiglu_pallas(x, w1_t, b1, w2_t, b2, w3_t, b3, *, tm=None, tn=None):
    """Fused SwiGLU: w3(silu(w1(x)) * w2(x)).

    x:    (..., inner)
    wK_t: (inner, inner) pre-transposed weights (nn.Linear.weight.T), ideally
          already bf16 so no per-call cast pass over the weights is needed.
    bK:   (inner,)
    """
    orig_shape = x.shape
    out_dtype = x.dtype
    inner = orig_shape[-1]
    # TODO(synk): pad `inner` (and the weights/biases) when it is not a multiple
    # of 128 instead of asserting; typical transformer widths are 128-aligned.
    assert inner % 128 == 0, "inner must be a multiple of 128 (lane-dense tiles)"

    x2d = x.reshape(-1, inner)
    M = x2d.shape[0]

    use_scratch = out_dtype != jnp.float32   # f32 output: accumulate into o_ref
    out_bytes = jnp.dtype(out_dtype).itemsize

    vmem_cap, multi_tc = _tpu_generation_info()
    vmem_budget = int(vmem_cap * 0.80)       # headroom for compiler scratch

    auto_tm, auto_tn = _choose_tiles(M, inner, out_bytes, use_scratch,
                                     vmem_budget, multi_tc)
    tm = int(tm) if tm is not None else auto_tm
    tn = int(tn) if tn is not None else auto_tn
    assert inner % tn == 0 and tm % 8 == 0

    # Pad rows so the grid is exact; padded rows are sliced off afterwards.
    m_pad = _round_up(M, tm)
    if m_pad != M:
        x2d = jnp.pad(x2d, ((0, m_pad - M), (0, 0)))

    # bf16 matmul inputs; these are no-ops when the caller pre-cast the weights.
    x2d = x2d.astype(_COMPUTE_DTYPE)
    w1c = w1_t if w1_t.dtype == _COMPUTE_DTYPE else w1_t.astype(_COMPUTE_DTYPE)
    w2c = w2_t if w2_t.dtype == _COMPUTE_DTYPE else w2_t.astype(_COMPUTE_DTYPE)
    w3c = w3_t if w3_t.dtype == _COMPUTE_DTYPE else w3_t.astype(_COMPUTE_DTYPE)
    b1r = b1.astype(jnp.float32).reshape(1, inner)
    b2r = b2.astype(jnp.float32).reshape(1, inner)
    b3r = b3.astype(jnp.float32).reshape(1, inner)

    grid = (m_pad // tm, inner // tn)
    scratch_shapes = [pltpu.VMEM((tm, inner), jnp.float32)] if use_scratch else []

    est = _vmem_estimate(tm, tn, inner, out_bytes, use_scratch)
    # Default to the generation budget; allow explicit oversized user tiles to
    # use up to physical VMEM.
    vmem_limit = int(min(max(vmem_budget, int(1.25 * est)), vmem_cap))

    out2d = pl.pallas_call(
        _swiglu_kernel,
        out_shape=jax.ShapeDtypeStruct((m_pad, inner), out_dtype),
        grid=grid,
        in_specs=[
            pl.BlockSpec((tm, inner), lambda i, j: (i, 0)),   # x rows (resident over j)
            pl.BlockSpec((inner, tn), lambda i, j: (0, j)),   # w1^T column slice
            pl.BlockSpec((1, tn), lambda i, j: (0, j)),       # b1 slice
            pl.BlockSpec((inner, tn), lambda i, j: (0, j)),   # w2^T column slice
            pl.BlockSpec((1, tn), lambda i, j: (0, j)),       # b2 slice
            pl.BlockSpec((tn, inner), lambda i, j: (j, 0)),   # w3^T row slice
            pl.BlockSpec((1, inner), lambda i, j: (0, 0)),    # b3 (fetched once)
        ],
        out_specs=pl.BlockSpec((tm, inner), lambda i, j: (i, 0)),
        scratch_shapes=scratch_shapes,
        compiler_params=pltpu.CompilerParams(
            dimension_semantics=("parallel", "arbitrary"),
            vmem_limit_bytes=vmem_limit),
    )(x2d, w1c, b1r, w2c, b2r, w3c, b3r)

    out2d = out2d[:M]
    return out2d.reshape(orig_shape)


def _init_linear_params(key, inner):
    """Deterministic init mimicking nn.Linear's uniform(-1/sqrt(in), 1/sqrt(in))."""
    kw, kb = jax.random.split(key)
    bound = 1.0 / (inner ** 0.5)
    w = jax.random.uniform(kw, (inner, inner), jnp.float32, -bound, bound)  # (out, in)
    b = jax.random.uniform(kb, (inner,), jnp.float32, -bound, bound)
    return w, b


def _reference(x, w1, b1, w2, b2, w3, b3):
    x1 = x @ w1.T + b1
    x2 = x @ w2.T + b2
    hidden = jax.nn.silu(x1) * x2
    return hidden @ w3.T + b3


if __name__ == "__main__":
    key = jax.random.PRNGKey(0)
    k_x, k1, k2, k3 = jax.random.split(key, 4)

    # Small but non-degenerate: M = 2*72 = 144 rows, inner = 256.
    batch, seq, inner = 2, 72, 256
    x = jax.random.normal(k_x, (batch, seq, inner), jnp.float32)

    w1, b1 = _init_linear_params(k1, inner)
    w2, b2 = _init_linear_params(k2, inner)
    w3, b3 = _init_linear_params(k3, inner)

    # Recommended usage: pre-transpose and pre-cast the weights to bf16 ONCE so
    # the kernel reads bf16 directly (no per-call f32->bf16 cast pass).
    w1t, w2t, w3t = (w.T.astype(jnp.bfloat16) for w in (w1, w2, w3))

    ref = _reference(x, w1, b1, w2, b2, w3, b3)

    # 1) Auto-tiled path (generation-aware tile / VMEM-budget selection).
    out = jax.block_until_ready(swiglu_pallas(x, w1t, b1, w2t, b2, w3t, b3))
    assert out.shape == x.shape
    assert jnp.allclose(out, ref, atol=5e-2, rtol=5e-2), (
        "auto-tile mismatch vs reference, max abs err = "
        f"{float(jnp.max(jnp.abs(out - ref)))}")

    # 2) Small explicit tiles: exercises row padding (144 -> 192) and the
    #    2-step w3 reduction accumulating directly into the f32 output block.
    out_small = jax.block_until_ready(
        swiglu_pallas(x, w1t, b1, w2t, b2, w3t, b3, tm=64, tn=128))
    assert jnp.allclose(out_small, ref, atol=5e-2, rtol=5e-2), (
        "small-tile mismatch vs reference, max abs err = "
        f"{float(jnp.max(jnp.abs(out_small - ref)))}")

    # 3) bf16 activations: exercises the f32 VMEM accumulator scratch path
    #    (non-f32 output dtype).
    out_bf16 = jax.block_until_ready(
        swiglu_pallas(x.astype(jnp.bfloat16), w1t, b1, w2t, b2, w3t, b3))
    assert out_bf16.dtype == jnp.bfloat16
    assert jnp.allclose(out_bf16.astype(jnp.float32), ref, atol=1e-1, rtol=1e-1), (
        "bf16 mismatch vs reference, max abs err = "
        f"{float(jnp.max(jnp.abs(out_bf16.astype(jnp.float32) - ref)))}")

    print("KERNEL_OK")
</pallas_src>

<mosaic_0001>
module attributes {stable_mosaic.version = 11 : i64} {
  func.func @_swiglu_kernel(%arg0: i32, %arg1: i32, %arg2: memref<80x256xbf16, #tpu.memory_space<vmem>>, %arg3: memref<256x256xbf16, #tpu.memory_space<vmem>>, %arg4: memref<1x256xf32, #tpu.memory_space<vmem>>, %arg5: memref<256x256xbf16, #tpu.memory_space<vmem>>, %arg6: memref<1x256xf32, #tpu.memory_space<vmem>>, %arg7: memref<256x256xbf16, #tpu.memory_space<vmem>>, %arg8: memref<1x256xf32, #tpu.memory_space<vmem>>, %arg9: memref<80x256xf32, #tpu.memory_space<vmem>>) attributes {dimension_semantics = [#tpu.dimension_semantics<parallel>, #tpu.dimension_semantics<arbitrary>], iteration_bounds = array<i64: 2, 1>, scalar_prefetch = 0 : i64, scratch_operands = 0 : i64, tpu.core_type = #tpu.core_type<tc>, window_params = [{transform_indices = @transform_0, window_bounds = array<i64: 80, 256>}, {transform_indices = @transform_1, window_bounds = array<i64: 256, 256>}, {transform_indices = @transform_2, window_bounds = array<i64: 1, 256>}, {transform_indices = @transform_3, window_bounds = array<i64: 256, 256>}, {transform_indices = @transform_4, window_bounds = array<i64: 1, 256>}, {transform_indices = @transform_5, window_bounds = array<i64: 256, 256>}, {pipeline_mode = #tpu.pipeline_mode<synchronous>, transform_indices = @transform_6, window_bounds = array<i64: 1, 256>}, {transform_indices = @transform_7, window_bounds = array<i64: 80, 256>}]} {
    %c0_i32 = arith.constant 0 : i32
    %0 = arith.cmpi eq, %arg1, %c0_i32 : i32
    %1 = arith.extui %0 : i1 to i32
    %c0_i32_0 = arith.constant 0 : i32
    %2 = arith.cmpi ne, %1, %c0_i32_0 : i32
    scf.if %2 {
      %cst_19 = arith.constant 0.000000e+00 : f32
      %27 = vector.broadcast %cst_19 : f32 to vector<80x256xf32>
      %c0_20 = arith.constant 0 : index
      %c0_21 = arith.constant 0 : index
      %28 = vector.load %arg8[%c0_20, %c0_21] : memref<1x256xf32, #tpu.memory_space<vmem>>, vector<1x256xf32>
      %29 = vector.broadcast %28 : vector<1x256xf32> to vector<80x256xf32>
      %30 = arith.addf %27, %29 : vector<80x256xf32>
      %c0_22 = arith.constant 0 : index
      %c0_23 = arith.constant 0 : index
      %31 = vector.load %arg9[%c0_22, %c0_23] : memref<80x256xf32, #tpu.memory_space<vmem>>, vector<80x256xf32>
      tpu.vector_store %arg9[%c0_22, %c0_23], %30 {strides = array<i32>} : memref<80x256xf32, #tpu.memory_space<vmem>>, vector<80x256xf32>,
    } else {
    }
    %c0 = arith.constant 0 : index
    %c0_1 = arith.constant 0 : index
    %3 = vector.load %arg2[%c0, %c0_1] : memref<80x256xbf16, #tpu.memory_space<vmem>>, vector<80x256xbf16>
    %c0_2 = arith.constant 0 : index
    %c0_3 = arith.constant 0 : index
    %4 = vector.load %arg3[%c0_2, %c0_3] : memref<256x256xbf16, #tpu.memory_space<vmem>>, vector<256x256xbf16>
    %cst = arith.constant dense<0.000000e+00> : vector<80x256xf32>
    %5 = tpu.matmul %3, %4, %cst {dimension_numbers = #tpu.dot_dimension_numbers<[1], [0], [0], [1], [0, 0, 1, 1], [], []>} : vector<80x256xbf16>, vector<256x256xbf16>, vector<80x256xf32> -> vector<80x256xf32>
    %c0_4 = arith.constant 0 : index
    %c0_5 = arith.constant 0 : index
    %6 = vector.load %arg4[%c0_4, %c0_5] : memref<1x256xf32, #tpu.memory_space<vmem>>, vector<1x256xf32>
    %7 = vector.broadcast %6 : vector<1x256xf32> to vector<80x256xf32>
    %8 = arith.addf %5, %7 : vector<80x256xf32>
    %c0_6 = arith.constant 0 : index
    %c0_7 = arith.constant 0 : index
    %9 = vector.load %arg5[%c0_6, %c0_7] : memref<256x256xbf16, #tpu.memory_space<vmem>>, vector<256x256xbf16>
    %cst_8 = arith.constant dense<0.000000e+00> : vector<80x256xf32>
    %10 = tpu.matmul %3, %9, %cst_8 {dimension_numbers = #tpu.dot_dimension_numbers<[1], [0], [0], [1], [0, 0, 1, 1], [], []>} : vector<80x256xbf16>, vector<256x256xbf16>, vector<80x256xf32> -> vector<80x256xf32>
    %c0_9 = arith.constant 0 : index
    %c0_10 = arith.constant 0 : index
    %11 = vector.load %arg6[%c0_9, %c0_10] : memref<1x256xf32, #tpu.memory_space<vmem>>, vector<1x256xf32>
    %12 = vector.broadcast %11 : vector<1x256xf32> to vector<80x256xf32>
    %13 = arith.addf %10, %12 : vector<80x256xf32>
    %14 = arith.negf %8 : vector<80x256xf32>
    %15 = math.exp %14 : vector<80x256xf32>
    %cst_11 = arith.constant 1.000000e+00 : f32
    %16 = vector.broadcast %cst_11 : f32 to vector<80x256xf32>
    %17 = arith.addf %16, %15 : vector<80x256xf32>
    %18 = arith.divf %16, %17 : vector<80x256xf32>
    %19 = arith.mulf %8, %18 : vector<80x256xf32>
    %20 = arith.mulf %19, %13 : vector<80x256xf32>
    %c0_12 = arith.constant 0 : index
    %c0_13 = arith.constant 0 : index
    %21 = vector.load %arg9[%c0_12, %c0_13] : memref<80x256xf32, #tpu.memory_space<vmem>>, vector<80x256xf32>
    %22 = arith.truncf %20 : vector<80x256xf32> to vector<80x256xbf16>
    %c0_14 = arith.constant 0 : index
    %c0_15 = arith.constant 0 : index
    %23 = vector.load %arg7[%c0_14, %c0_15] : memref<256x256xbf16, #tpu.memory_space<vmem>>, vector<256x256xbf16>
    %cst_16 = arith.constant dense<0.000000e+00> : vector<80x256xf32>
    %24 = tpu.matmul %22, %23, %cst_16 {dimension_numbers = #tpu.dot_dimension_numbers<[1], [0], [0], [1], [0, 0, 1, 1], [], []>} : vector<80x256xbf16>, vector<256x256xbf16>, vector<80x256xf32> -> vector<80x256xf32>
    %25 = arith.addf %21, %24 : vector<80x256xf32>
    %c0_17 = arith.constant 0 : index
    %c0_18 = arith.constant 0 : index
    %26 = vector.load %arg9[%c0_17, %c0_18] : memref<80x256xf32, #tpu.memory_space<vmem>>, vector<80x256xf32>
    tpu.vector_store %arg9[%c0_17, %c0_18], %25 {strides = array<i32>} : memref<80x256xf32, #tpu.memory_space<vmem>>, vector<80x256xf32>,
    return
  }
  func.func @transform_0(%arg0: i32, %arg1: i32) -> (i32, i32) {
    %c0_i32 = arith.constant 0 : i32
    %c0_i32_0 = arith.constant 0 : i32
    return %arg0, %c0_i32 : i32, i32
  }
  func.func @transform_1(%arg0: i32, %arg1: i32) -> (i32, i32) {
    %c0_i32 = arith.constant 0 : i32
    %c0_i32_0 = arith.constant 0 : i32
    return %c0_i32, %arg1 : i32, i32
  }
  func.func @transform_2(%arg0: i32, %arg1: i32) -> (i32, i32) {
    %c0_i32 = arith.constant 0 : i32
    %c0_i32_0 = arith.constant 0 : i32
    return %c0_i32, %arg1 : i32, i32
  }
  func.func @transform_3(%arg0: i32, %arg1: i32) -> (i32, i32) {
    %c0_i32 = arith.constant 0 : i32
    %c0_i32_0 = arith.constant 0 : i32
    return %c0_i32, %arg1 : i32, i32
  }
  func.func @transform_4(%arg0: i32, %arg1: i32) -> (i32, i32) {
    %c0_i32 = arith.constant 0 : i32
    %c0_i32_0 = arith.constant 0 : i32
    return %c0_i32, %arg1 : i32, i32
  }
  func.func @transform_5(%arg0: i32, %arg1: i32) -> (i32, i32) {
    %c0_i32 = arith.constant 0 : i32
    %c0_i32_0 = arith.constant 0 : i32
    return %arg1, %c0_i32 : i32, i32
  }
  func.func @transform_6(%arg0: i32, %arg1: i32) -> (i32, i32) {
    %c0_i32 = arith.constant 0 : i32
    %c0_i32_0 = arith.constant 0 : i32
    %c0_i32_1 = arith.constant 0 : i32
    return %c0_i32, %c0_i32_0 : i32, i32
  }
  func.func @transform_7(%arg0: i32, %arg1: i32) -> (i32, i32) {
    %c0_i32 = arith.constant 0 : i32
    %c0_i32_0 = arith.constant 0 : i32
    return %arg0, %c0_i32 : i32, i32
  }
}

</mosaic_0001>

<llo_original>
// kernel: swiglu_pallas.1
$region0: #{swiglu_pallas.1}
  #allocation0 [shape = 'u32[]', space=smem, size = 0x4, offset = 0x4, fixed_abs, tag = 'smem constant byte address 0x4 - core index']
  #allocation1 [shape = 'u32[144,128]{1,0:T(1,128)}', space=vmem, size = 0x12000, scoped, tag = 'internal scratch']
  %s0 = inlined_call_operand.vmem [shape: bf16[160,256], index: 0, kind: input, shape index: {}]
  %s1 = inlined_call_operand.vmem [shape: bf16[256,256], index: 1, kind: input, shape index: {}]
  %s2 = inlined_call_operand.vmem [shape: f32[1,256], index: 2, kind: input, shape index: {}]
  %s3 = inlined_call_operand.vmem [shape: bf16[256,256], index: 3, kind: input, shape index: {}]
  %s4 = inlined_call_operand.vmem [shape: f32[1,256], index: 4, kind: input, shape index: {}]
  %s5 = inlined_call_operand.hbm [shape: bf16[256,256], index: 5, kind: input, shape index: {}]
  %s6 = inlined_call_operand.vmem [shape: f32[1,256], index: 6, kind: input, shape index: {}]
  %s7 = inlined_call_operand.vmem [shape: f32[160,256], index: 7, kind: output, shape index: {}]
  %s8 = sld [smem:[#allocation0]]
  $region69: #{swiglu_pallas.1} parent=0
    _
  %s10 = ssub.s32 1, %s8
  %s11 = scalar_select 0, %s10, %s8
  $region1: #{swiglu_pallas.1} parent=0
    #allocation2 [shape = 'u8[131072]{0}', space=vmem, size = 0x20000, scoped, tag = 'input window, operand 5, single buffered']
    #allocation3 [shape = 's32[2]{0}', space=sflag, size = 0x8, scoped, tag = 'scoped memory for swiglu_pallas.1']
    %12 = vsyncpa [#allocation3], 0
    loop: start=0, step=1, limit=4
    $region2: #{swiglu_pallas.1} parent=1 // loop_pre_header
      _
    $region3: #{swiglu_pallas.1} parent=1 // loop_header
      %s14 = sphi 0, %s18
      %p15 = scmp.ge.s32.totalorder %s14, 4
      %s21 = sphi 0, %s33
      %s22 = sphi 0, %s29
      %s23 = sphi 0, %s21
      %s24 = sphi 0, %s22
      %s25 = sphi 0, %s23
      %s26 = sphi 0, %s24
      %s36 = sphi 0, %s38
      %s39 = sphi 0, %s36
      %s40 = sphi 0, %s39
      %s56 = sphi 0, %s40
      %s62 = sphi 0, %s64
      %s65 = sphi 0, %s62
      %s66 = sphi 0, %s65
      %s82 = sphi 0, %s66
      %s88 = sphi 0, %s90
      %s91 = sphi 0, %s88
      %s92 = sphi 0, %s91
      %s108 = sphi 0, %s92
      %s114 = sphi 0, %s116
      %s117 = sphi 0, %s114
      %s118 = sphi 0, %s117
      %s134 = sphi 0, %s118
      %s140 = sphi 0, %s142
      %s143 = sphi 0, %s140
      %s144 = sphi 0, %s143
      %s160 = sphi 0, %s144
      %s166 = sphi 0, %s168
      %s169 = sphi 0, %s166
      %s170 = sphi 0, %s169
      %s186 = sphi 0, %s170
      %s190 = sphi 0, %s190
      %s192 = sphi 0, %s190
      %s193 = sphi 0, %s192
      %s207 = sphi 0, %s193
      %s213 = sphi 0, %s215
      %s216 = sphi 0, %s213
      %s217 = sphi 0, %s216
      %s233 = sphi 0, %s217
    $region4: #{swiglu_pallas.1} parent=1 // loop_header_branch
      %17 = sbr.rel (%p15) target = $region8
    $region5: #{swiglu_pallas.1} parent=1 // loop_body
      %s19 = ssub.s32 %s14, 1
      %s20 = ssub.s32 %s14, 2
      %s27 = sadd.s32 1, %s22
      %p28 = scmp.ge.s32.totalorder %s27, 1
      %s29 = scalar_select %p28, 0, %s27
      %s30 = sadd.s32 1, %s21
      %s31 = scalar_select %p28, %s30, %s21
      %p32 = scmp.ge.s32.totalorder %s31, 2
      %s33 = scalar_select %p32, 0, %s31
      %s34 = ssub.s32 %s21, %s33
      %p35 = scmp.eq.s32.totalorder %s34, 0
      %s37 = sadd.s32 %s36, 1
      %s38 = scalar_select %p35, %s36, %s37
      %p41 = pneg %p35
      %p42 = scmp.eq.s32.totalorder %s14, 1
      %p43 = por %p41, %p42
      %p44 = scmp.ne.s32.totalorder %s36, %s39
      %p45 = scmp.eq.s32.totalorder %s14, 0
      %p46 = por %p44, %p45
      %p47 = scmp.ne.s32.totalorder %s36, %s39
      %p48 = scmp.eq.s32.totalorder %s19, 1
      %p49 = por %p47, %p48
      %p50 = scmp.ne.s32.totalorder %s39, %s40
      %p51 = scmp.eq.s32.totalorder %s19, 0
      %p52 = por %p50, %p51
      %p53 = scmp.ne.s32.totalorder %s39, %s40
      %p54 = scmp.eq.s32.totalorder %s20, 1
      %p55 = por %p53, %p54
      %p57 = scmp.ne.s32.totalorder %s40, %s56
      %p58 = scmp.eq.s32.totalorder %s20, 0
      %p59 = por %p57, %p58
      %s60 = ssub.s32 %s22, %s29
      %p61 = scmp.eq.s32.totalorder %s60, 0
      %s63 = sadd.s32 %s62, 1
      %s64 = scalar_select %p61, %s62, %s63
      %p67 = pneg %p61
      %p68 = scmp.eq.s32.totalorder %s14, 1
      %p69 = por %p67, %p68
      %p70 = scmp.ne.s32.totalorder %s62, %s65
      %p71 = scmp.eq.s32.totalorder %s14, 0
      %p72 = por %p70, %p71
      %p73 = scmp.ne.s32.totalorder %s62, %s65
      %p74 = scmp.eq.s32.totalorder %s19, 1
      %p75 = por %p73, %p74
      %p76 = scmp.ne.s32.totalorder %s65, %s66
      %p77 = scmp.eq.s32.totalorder %s19, 0
      %p78 = por %p76, %p77
      %p79 = scmp.ne.s32.totalorder %s65, %s66
      %p80 = scmp.eq.s32.totalorder %s20, 1
      %p81 = por %p79, %p80
      %p83 = scmp.ne.s32.totalorder %s66, %s82
      %p84 = scmp.eq.s32.totalorder %s20, 0
      %p85 = por %p83, %p84
      %s86 = ssub.s32 %s22, %s29
      %p87 = scmp.eq.s32.totalorder %s86, 0
      %s89 = sadd.s32 %s88, 1
      %s90 = scalar_select %p87, %s88, %s89
      %p93 = pneg %p87
      %p94 = scmp.eq.s32.totalorder %s14, 1
      %p95 = por %p93, %p94
      %p96 = scmp.ne.s32.totalorder %s88, %s91
      %p97 = scmp.eq.s32.totalorder %s14, 0
      %p98 = por %p96, %p97
      %p99 = scmp.ne.s32.totalorder %s88, %s91
      %p100 = scmp.eq.s32.totalorder %s19, 1
      %p101 = por %p99, %p100
      %p102 = scmp.ne.s32.totalorder %s91, %s92
      %p103 = scmp.eq.s32.totalorder %s19, 0
      %p104 = por %p102, %p103
      %p105 = scmp.ne.s32.totalorder %s91, %s92
      %p106 = scmp.eq.s32.totalorder %s20, 1
      %p107 = por %p105, %p106
      %p109 = scmp.ne.s32.totalorder %s92, %s108
      %p110 = scmp.eq.s32.totalorder %s20, 0
      %p111 = por %p109, %p110
      %s112 = ssub.s32 %s22, %s29
      %p113 = scmp.eq.s32.totalorder %s112, 0
      %s115 = sadd.s32 %s114, 1
      %s116 = scalar_select %p113, %s114, %s115
      %p119 = pneg %p113
      %p120 = scmp.eq.s32.totalorder %s14, 1
      %p121 = por %p119, %p120
      %p122 = scmp.ne.s32.totalorder %s114, %s117
      %p123 = scmp.eq.s32.totalorder %s14, 0
      %p124 = por %p122, %p123
      %p125 = scmp.ne.s32.totalorder %s114, %s117
      %p126 = scmp.eq.s32.totalorder %s19, 1
      %p127 = por %p125, %p126
      %p128 = scmp.ne.s32.totalorder %s117, %s118
      %p129 = scmp.eq.s32.totalorder %s19, 0
      %p130 = por %p128, %p129
      %p131 = scmp.ne.s32.totalorder %s117, %s118
      %p132 = scmp.eq.s32.totalorder %s20, 1
      %p133 = por %p131, %p132
      %p135 = scmp.ne.s32.totalorder %s118, %s134
      %p136 = scmp.eq.s32.totalorder %s20, 0
      %p137 = por %p135, %p136
      %s138 = ssub.s32 %s22, %s29
      %p139 = scmp.eq.s32.totalorder %s138, 0
      %s141 = sadd.s32 %s140, 1
      %s142 = scalar_select %p139, %s140, %s141
      %p145 = pneg %p139
      %p146 = scmp.eq.s32.totalorder %s14, 1
      %p147 = por %p145, %p146
      %p148 = scmp.ne.s32.totalorder %s140, %s143
      %p149 = scmp.eq.s32.totalorder %s14, 0
      %p150 = por %p148, %p149
      %p151 = scmp.ne.s32.totalorder %s140, %s143
      %p152 = scmp.eq.s32.totalorder %s19, 1
      %p153 = por %p151, %p152
      %p154 = scmp.ne.s32.totalorder %s143, %s144
      %p155 = scmp.eq.s32.totalorder %s19, 0
      %p156 = por %p154, %p155
      %p157 = scmp.ne.s32.totalorder %s143, %s144
      %p158 = scmp.eq.s32.totalorder %s20, 1
      %p159 = por %p157, %p158
      %p161 = scmp.ne.s32.totalorder %s144, %s160
      %p162 = scmp.eq.s32.totalorder %s20, 0
      %p163 = por %p161, %p162
      %s164 = ssub.s32 %s22, %s29
      %p165 = scmp.eq.s32.totalorder %s164, 0
      %s167 = sadd.s32 %s166, 1
      %s168 = scalar_select %p165, %s166, %s167
      %p171 = pneg %p165
      %p172 = scmp.eq.s32.totalorder %s14, 1
      %p173 = por %p171, %p172
      %p174 = scmp.ne.s32.totalorder %s166, %s169
      %p175 = scmp.eq.s32.totalorder %s14, 0
      %p176 = por %p174, %p175
      %p177 = scmp.ne.s32.totalorder %s166, %s169
      %p178 = scmp.eq.s32.totalorder %s19, 1
      %p179 = por %p177, %p178
      %p180 = scmp.ne.s32.totalorder %s169, %s170
      %p181 = scmp.eq.s32.totalorder %s19, 0
      %p182 = por %p180, %p181
      %p183 = scmp.ne.s32.totalorder %s169, %s170
      %p184 = scmp.eq.s32.totalorder %s20, 1
      %p185 = por %p183, %p184
      %p187 = scmp.ne.s32.totalorder %s170, %s186
      %p188 = scmp.eq.s32.totalorder %s20, 0
      %p189 = por %p187, %p188
      %s191 = sadd.s32 %s190, 1
      %p194 = scmp.eq.s32.totalorder %s14, 1
      %p195 = scmp.ne.s32.totalorder %s190, %s192
      %p196 = scmp.eq.s32.totalorder %s14, 0
      %p197 = por %p195, %p196
      %p198 = scmp.ne.s32.totalorder %s190, %s192
      %p199 = scmp.eq.s32.totalorder %s19, 1
      %p200 = por %p198, %p199
      %p201 = scmp.ne.s32.totalorder %s192, %s193
      %p202 = scmp.eq.s32.totalorder %s19, 0
      %p203 = por %p201, %p202
      %p204 = scmp.ne.s32.totalorder %s192, %s193
      %p205 = scmp.eq.s32.totalorder %s20, 1
      %p206 = por %p204, %p205
      %p208 = scmp.ne.s32.totalorder %s193, %s207
      %p209 = scmp.eq.s32.totalorder %s20, 0
      %p210 = por %p208, %p209
      %s211 = ssub.s32 %s21, %s33
      %p212 = scmp.eq.s32.totalorder %s211, 0
      %s214 = sadd.s32 %s213, 1
      %s215 = scalar_select %p212, %s213, %s214
      %p218 = pneg %p212
      %p219 = scmp.eq.s32.totalorder %s14, 1
      %p220 = por %p218, %p219
      %p221 = scmp.ne.s32.totalorder %s213, %s216
      %p222 = scmp.eq.s32.totalorder %s14, 0
      %p223 = por %p221, %p222
      %p224 = scmp.ne.s32.totalorder %s213, %s216
      %p225 = scmp.eq.s32.totalorder %s19, 1
      %p226 = por %p224, %p225
      %p227 = scmp.ne.s32.totalorder %s216, %s217
      %p228 = scmp.eq.s32.totalorder %s19, 0
      %p229 = por %p227, %p228
      %p230 = scmp.ne.s32.totalorder %s216, %s217
      %p231 = scmp.eq.s32.totalorder %s20, 1
      %p232 = por %p230, %p231
      %p234 = scmp.ne.s32.totalorder %s217, %s233
      %p235 = scmp.eq.s32.totalorder %s20, 0
      %p236 = por %p234, %p235
      %p237 = scmp.le.s32.totalorder 1, %s14
      %p238 = scmp.lt.s32.totalorder %s14, 3
      %p239 = pnand %p237, %p238
      %p240 = pneg %p239
      // Predicated region
      $region9: #{swiglu_pallas.1} parent=5 // pred_check
        _
      $region10: #{swiglu_pallas.1} parent=5 // pred_check_branch
        %242 = sbr.rel (%p239) target = $region12
      $region11: #{swiglu_pallas.1} parent=5 // pred_region
        %s243 = ssub.s32 %s14, 1
        // Predicated region
        $region13: #{swiglu_pallas.1} parent=11 // pred_check
          %p244 = pneg %p78
        $region14: #{swiglu_pallas.1} parent=11 // pred_check_branch
          %246 = sbr.rel (%p244) target = $region16
        $region15: #{swiglu_pallas.1} parent=11 // pred_region
          %s247 = smul.u32 2, %s24
          %p248 = scmp.lt.s32.totalorder %s247, 1
          %s249 = scalar_select %p248, %s247, 1
          %s250 = smul.addr %s249, 4
          %s251 = scalar_lea.vmem %s1, %s250
          %s252 = smul.u32 2, %s24
        $region16: #{swiglu_pallas.1} parent=11 // pred_fallthru
          _
        // Predicated region
        $region17: #{swiglu_pallas.1} parent=11 // pred_check
          %p253 = pneg %p104
        $region18: #{swiglu_pallas.1} parent=11 // pred_check_branch
          %255 = sbr.rel (%p253) target = $region20
        $region19: #{swiglu_pallas.1} parent=11 // pred_region
          %s256 = smul.u32 2, %s24
          %p257 = scmp.lt.s32.totalorder %s256, 1
          %s258 = scalar_select %p257, %s256, 1
          %s259 = scalar_lea.vmem %s2, %s258
          %s260 = smul.u32 2, %s24
        $region20: #{swiglu_pallas.1} parent=11 // pred_fallthru
          _
        // Predicated region
        $region21: #{swiglu_pallas.1} parent=11 // pred_check
          %p261 = pneg %p130
        $region22: #{swiglu_pallas.1} parent=11 // pred_check_branch
          %263 = sbr.rel (%p261) target = $region24
        $region23: #{swiglu_pallas.1} parent=11 // pred_region
          %s264 = smul.u32 2, %s24
          %p265 = scmp.lt.s32.totalorder %s264, 1
          %s266 = scalar_select %p265, %s264, 1
          %s267 = smul.addr %s266, 4
          %s268 = scalar_lea.vmem %s3, %s267
          %s269 = smul.u32 2, %s24
        $region24: #{swiglu_pallas.1} parent=11 // pred_fallthru
          _
        // Predicated region
        $region25: #{swiglu_pallas.1} parent=11 // pred_check
          %p270 = pneg %p156
        $region26: #{swiglu_pallas.1} parent=11 // pred_check_branch
          %272 = sbr.rel (%p270) target = $region28
        $region27: #{swiglu_pallas.1} parent=11 // pred_region
          %s273 = smul.u32 2, %s24
          %p274 = scmp.lt.s32.totalorder %s273, 1
          %s275 = scalar_select %p274, %s273, 1
          %s276 = scalar_lea.vmem %s4, %s275
          %s277 = smul.u32 2, %s24
        $region28: #{swiglu_pallas.1} parent=11 // pred_fallthru
          _
        // Predicated region
        $region29: #{swiglu_pallas.1} parent=11 // pred_check
          %p278 = pneg %p182
        $region30: #{swiglu_pallas.1} parent=11 // pred_check_branch
          %280 = sbr.rel (%p278) target = $region32
        $region31: #{swiglu_pallas.1} parent=11 // pred_region
          %s281 = smul.u32 32, %s24
          %s283 = ssub.s32 4096, 4096
          %284 = vsyncadd [#allocation3], %s283
          %s285 = smul.addr %s281, 2
          %s286 = smul.addr %s285, 64
          %s287 = scalar_lea.hbm %s5, %s286
          %s288 = sshll.u32 [#allocation2], 4
          %s289 = int_to_ptr.vmem [resolvable:$true] %s288
          %294 = dma.hbm_to_vmem [thread:$0]  %s287, 4096, %s289, [#allocation3], 128, 128, 8
        $region32: #{swiglu_pallas.1} parent=11 // pred_fallthru
          _
        // Predicated region
        $region33: #{swiglu_pallas.1} parent=11 // pred_check
          %p295 = pneg %p203
        $region34: #{swiglu_pallas.1} parent=11 // pred_check_branch
          %297 = sbr.rel (%p295) target = $region36
        $region35: #{swiglu_pallas.1} parent=11 // pred_region
          _
        $region36: #{swiglu_pallas.1} parent=11 // pred_fallthru
          _
      $region12: #{swiglu_pallas.1} parent=5 // pred_fallthru
        _
      %p298 = scmp.lt.s32.totalorder %s14, 2
      // Predicated region
      $region37: #{swiglu_pallas.1} parent=5 // pred_check
        %p299 = pneg %p298
      $region38: #{swiglu_pallas.1} parent=5 // pred_check_branch
        %301 = sbr.rel (%p299) target = $region40
      $region39: #{swiglu_pallas.1} parent=5 // pred_region
        // Predicated region
        $region41: #{swiglu_pallas.1} parent=39 // pred_check
          %p302 = pneg %p46
        $region42: #{swiglu_pallas.1} parent=39 // pred_check_branch
          %304 = sbr.rel (%p302) target = $region44
        $region43: #{swiglu_pallas.1} parent=39 // pred_region
          %s305 = smul.u32 10, %s21
          %p306 = scmp.lt.s32.totalorder %s305, 19
          %s307 = scalar_select %p306, %s305, 19
          %s308 = smul.addr %s307, 2
          %s309 = smul.addr %s308, 4
          %s310 = scalar_lea.vmem %s0, %s309
          %s311 = smul.u32 10, %s21
        $region44: #{swiglu_pallas.1} parent=39 // pred_fallthru
          _
      $region40: #{swiglu_pallas.1} parent=5 // pred_fallthru
        _
      %p312 = scmp.le.s32.totalorder 1, %s14
      %p313 = scmp.lt.s32.totalorder %s14, 3
      %p314 = pnand %p312, %p313
      %p315 = pneg %p314
      // Predicated region
      $region45: #{swiglu_pallas.1} parent=5 // pred_check
        _
      $region46: #{swiglu_pallas.1} parent=5 // pred_check_branch
        %317 = sbr.rel (%p314) target = $region48
      $region47: #{swiglu_pallas.1} parent=5 // pred_region
        %s318 = ssub.s32 %s14, 1
        // Predicated region
        $region49: #{swiglu_pallas.1} parent=47 // pred_check
          %p319 = pneg %p182
        $region50: #{swiglu_pallas.1} parent=47 // pred_check_branch
          %321 = sbr.rel (%p319) target = $region52
        $region51: #{swiglu_pallas.1} parent=47 // pred_region
          %322 = dma.done [#allocation3], 4096
        $region52: #{swiglu_pallas.1} parent=47 // pred_fallthru
          _
        %s323 = smul.u32 10, %s23
        %p324 = scmp.lt.s32.totalorder %s323, 19
        %s325 = scalar_select %p324, %s323, 19
        %s326 = smul.addr %s325, 2
        %s327 = smul.addr %s326, 4
        %s328 = scalar_lea.vmem %s0, %s327
        %p329 = pneg %p52
        %p330 = pneg %p49
        %s331 = smul.u32 2, %s24
        %p332 = scmp.lt.s32.totalorder %s331, 1
        %s333 = scalar_select %p332, %s331, 1
        %s334 = smul.addr %s333, 4
        %s335 = scalar_lea.vmem %s1, %s334
        %p336 = pneg %p78
        %p337 = pneg %p75
        %s338 = smul.u32 2, %s24
        %p339 = scmp.lt.s32.totalorder %s338, 1
        %s340 = scalar_select %p339, %s338, 1
        %s341 = scalar_lea.vmem %s2, %s340
        %p342 = pneg %p104
        %p343 = pneg %p101
        %s344 = smul.u32 2, %s24
        %p345 = scmp.lt.s32.totalorder %s344, 1
        %s346 = scalar_select %p345, %s344, 1
        %s347 = smul.addr %s346, 4
        %s348 = scalar_lea.vmem %s3, %s347
        %p349 = pneg %p130
        %p350 = pneg %p127
        %s351 = smul.u32 2, %s24
        %p352 = scmp.lt.s32.totalorder %s351, 1
        %s353 = scalar_select %p352, %s351, 1
        %s354 = scalar_lea.vmem %s4, %s353
        %p355 = pneg %p156
        %p356 = pneg %p153
        %p357 = pneg %p182
        %p358 = pneg %p179
        %p359 = pneg %p203
        %p360 = pneg %p200
        %p361 = pneg %p229
        %p362 = pneg %p226
        %s363 = smul.u32 10, %s23
        %p364 = scmp.lt.s32.totalorder %s363, 19
        %s365 = scalar_select %p364, %s363, 19
        %s366 = smul.addr %s365, 2
        %s367 = smul.addr %s366, 8
        %s368 = scalar_lea.vmem %s7, %s367
        %s369 = smul.u32 10, %s23
        %p370 = scmp.lt.s32.totalorder %s369, 19
        %s371 = scalar_select %p370, %s369, 19
        %s372 = smul.addr %s371, 2
        %s373 = smul.addr %s372, 4
        %s374 = scalar_lea.vmem %s0, %s373
        %s375 = smul.u32 10, %s23
        %s376 = smul.u32 2, %s24
        %p377 = scmp.lt.s32.totalorder %s376, 1
        %s378 = scalar_select %p377, %s376, 1
        %s379 = smul.addr %s378, 4
        %s380 = scalar_lea.vmem %s1, %s379
        %s381 = smul.u32 2, %s24
        %s382 = smul.u32 2, %s24
        %p383 = scmp.lt.s32.totalorder %s382, 1
        %s384 = scalar_select %p383, %s382, 1
        %s385 = scalar_lea.vmem %s2, %s384
        %s386 = smul.u32 2, %s24
        %s387 = smul.u32 2, %s24
        %p388 = scmp.lt.s32.totalorder %s387, 1
        %s389 = scalar_select %p388, %s387, 1
        %s390 = smul.addr %s389, 4
        %s391 = scalar_lea.vmem %s3, %s390
        %s392 = smul.u32 2, %s24
        %s393 = smul.u32 2, %s24
        %p394 = scmp.lt.s32.totalorder %s393, 1
        %s395 = scalar_select %p394, %s393, 1
        %s396 = scalar_lea.vmem %s4, %s395
        %s397 = smul.u32 2, %s24
        %s398 = smul.u32 32, %s24
        %s399 = smul.u32 10, %s23
        %p400 = scmp.lt.s32.totalorder %s399, 19
        %s401 = scalar_select %p400, %s399, 19
        %s402 = smul.addr %s401, 2
        %s403 = smul.addr %s402, 8
        %s404 = scalar_lea.vmem %s7, %s403
        %s405 = smul.u32 10, %s23
        %p406 = scmp.eq.s32.totalorder %s24, 0
        // Predicated region
        $region53: #{swiglu_pallas.1} parent=47 // pred_check
          %p407 = pneg %p406
        $region54: #{swiglu_pallas.1} parent=47 // pred_check_branch
          %409 = sbr.rel (%p407) target = $region56
        $region55: #{swiglu_pallas.1} parent=47 // pred_region
          %v410 = vld [vmem:[%s6] sm:$0x3]
          %v412 = vlaneseq
          %v413 = vshrl.u32 %v412, 7
          %v414 = vsub.s32 0, %v413
          %v415 = vrot.slane %v410, %v414
          %v416 = vlaneseq
          %v417 = vshrl.u32 %v416, 7
          %v418 = vsub.s32 1, %v417
          %v419 = vrot.slane %v410, %v418
          %v422 = vadd.f32 %v415, 0.0
          %v423 = vadd.f32 %v419, 0.0
          %424 = vst [vmem:[%s404] sm:$0xff] %v422
          %425 = vst [vmem:[%s404 + $0x8] sm:$0xff] %v423
          %426 = vst [vmem:[%s404 + $0x10] sm:$0xff] %v422
          %427 = vst [vmem:[%s404 + $0x18] sm:$0xff] %v423
          %428 = vst [vmem:[%s404 + $0x20] sm:$0xff] %v422
          %429 = vst [vmem:[%s404 + $0x28] sm:$0xff] %v423
          %430 = vst [vmem:[%s404 + $0x30] sm:$0xff] %v422
          %431 = vst [vmem:[%s404 + $0x38] sm:$0xff] %v423
          %432 = vst [vmem:[%s404 + $0x40] sm:$0xff] %v422
          %433 = vst [vmem:[%s404 + $0x48] sm:$0xff] %v423
          %434 = vst [vmem:[%s404 + $0x50] sm:$0xff] %v422
          %435 = vst [vmem:[%s404 + $0x58] sm:$0xff] %v423
          %436 = vst [vmem:[%s404 + $0x60] sm:$0xff] %v422
          %437 = vst [vmem:[%s404 + $0x68] sm:$0xff] %v423
          %438 = vst [vmem:[%s404 + $0x70] sm:$0xff] %v422
          %439 = vst [vmem:[%s404 + $0x78] sm:$0xff] %v423
          %440 = vst [vmem:[%s404 + $0x80] sm:$0xff] %v422
          %441 = vst [vmem:[%s404 + $0x88] sm:$0xff] %v423
          %442 = vst [vmem:[%s404 + $0x90] sm:$0xff] %v422
          %443 = vst [vmem:[%s404 + $0x98] sm:$0xff] %v423
        $region56: #{swiglu_pallas.1} parent=47 // pred_fallthru
          _
        %v444 = vld [vmem:[%s374] sm:$0xff]
        %v445 = vld [vmem:[%s374 + $0x8] sm:$0xff]
        %v446 = vld [vmem:[%s374 + $0x10] sm:$0xff]
        %v447 = vld [vmem:[%s374 + $0x18] sm:$0xff]
        %v448 = vld [vmem:[%s374 + $0x20] sm:$0xff]
        %v449 = vld [vmem:[%s374 + $0x28] sm:$0xff]
        %v450 = vld [vmem:[%s374 + $0x30] sm:$0xff]
        %v451 = vld [vmem:[%s374 + $0x38] sm:$0xff]
        %v452 = vld [vmem:[%s374 + $0x40] sm:$0xff]
        %v453 = vld [vmem:[%s374 + $0x48] sm:$0xff]
        %v454 = vld [vmem:[%s380] sm:$0xff]
        %v455 = vld [vmem:[%s380 + $0x8] sm:$0xff]
        %v456 = vld [vmem:[%s380 + $0x10] sm:$0xff]
        %v457 = vld [vmem:[%s380 + $0x18] sm:$0xff]
        %v458 = vld [vmem:[%s380 + $0x20] sm:$0xff]
        %v459 = vld [vmem:[%s380 + $0x28] sm:$0xff]
        %v460 = vld [vmem:[%s380 + $0x30] sm:$0xff]
        %v461 = vld [vmem:[%s380 + $0x38] sm:$0xff]
        %v462 = vld [vmem:[%s380 + $0x40] sm:$0xff]
        %v463 = vld [vmem:[%s380 + $0x48] sm:$0xff]
        %v464 = vld [vmem:[%s380 + $0x50] sm:$0xff]
        %v465 = vld [vmem:[%s380 + $0x58] sm:$0xff]
        %v466 = vld [vmem:[%s380 + $0x60] sm:$0xff]
        %v467 = vld [vmem:[%s380 + $0x68] sm:$0xff]
        %v468 = vld [vmem:[%s380 + $0x70] sm:$0xff]
        %v469 = vld [vmem:[%s380 + $0x78] sm:$0xff]
        %v470 = vld [vmem:[%s380 + $0x80] sm:$0xff]
        %v471 = vld [vmem:[%s380 + $0x88] sm:$0xff]
        %v472 = vld [vmem:[%s380 + $0x90] sm:$0xff]
        %v473 = vld [vmem:[%s380 + $0x98] sm:$0xff]
        %v474 = vld [vmem:[%s380 + $0xa0] sm:$0xff]
        %v475 = vld [vmem:[%s380 + $0xa8] sm:$0xff]
        %v476 = vld [vmem:[%s380 + $0xb0] sm:$0xff]
        %v477 = vld [vmem:[%s380 + $0xb8] sm:$0xff]
        %v478 = vld [vmem:[%s380 + $0xc0] sm:$0xff]
        %v479 = vld [vmem:[%s380 + $0xc8] sm:$0xff]
        %v480 = vld [vmem:[%s380 + $0xd0] sm:$0xff]
        %v481 = vld [vmem:[%s380 + $0xd8] sm:$0xff]
        %v482 = vld [vmem:[%s380 + $0xe0] sm:$0xff]
        %v483 = vld [vmem:[%s380 + $0xe8] sm:$0xff]
        %v484 = vld [vmem:[%s380 + $0xf0] sm:$0xff]
        %v485 = vld [vmem:[%s380 + $0xf8] sm:$0xff]
        %v486 = vld [vmem:[%s385] sm:$0x3]
        %v488 = vlaneseq
        %v489 = vshrl.u32 %v488, 7
        %v490 = vsub.s32 0, %v489
        %v491 = vrot.slane %v486, %v490
        %v492 = vlaneseq
        %v493 = vshrl.u32 %v492, 7
        %v494 = vsub.s32 1, %v493
        %v495 = vrot.slane %v486, %v494
        %v508 = vunpack.c.l.b16 %v444
        %v509 = vunpack.c.h.b16 %v444
        %v510 = vunpack.c.l.b16 %v445
        %v511 = vunpack.c.h.b16 %v445
        %v512 = vunpack.c.l.b16 %v446
        %v513 = vunpack.c.h.b16 %v446
        %v514 = vunpack.c.l.b16 %v447
        %v515 = vunpack.c.h.b16 %v447
        %v516 = vunpack.c.l.b16 %v448
        %v517 = vunpack.c.h.b16 %v448
        %v518 = vunpack.c.l.b16 %v449
        %v519 = vunpack.c.h.b16 %v449
        %v520 = vunpack.c.l.b16 %v450
        %v521 = vunpack.c.h.b16 %v450
        %v522 = vunpack.c.l.b16 %v451
        %v523 = vunpack.c.h.b16 %v451
        %v524 = vunpack.c.l.b16 %v452
        %v525 = vunpack.c.h.b16 %v452
        %v526 = vunpack.c.l.b16 %v453
        %v527 = vunpack.c.h.b16 %v453
        %v528 = vpack.c.b16 %v510, %v508
        %v529 = vpack.c.b16 %v511, %v509
        %v530 = vpack.c.b16 %v514, %v512
        %v531 = vpack.c.b16 %v515, %v513
        %v532 = vpack.c.b16 %v518, %v516
        %v533 = vpack.c.b16 %v519, %v517
        %v534 = vpack.c.b16 %v522, %v520
        %v535 = vpack.c.b16 %v523, %v521
        %v536 = vpack.c.b16 %v526, %v524
        %v537 = vpack.c.b16 %v527, %v525
        %v580 = vunpack.c.l.b16 %v454
        %v581 = vunpack.c.h.b16 %v454
        %v582 = vunpack.c.l.b16 %v455
        %v583 = vunpack.c.h.b16 %v455
        %v584 = vunpack.c.l.b16 %v456
        %v585 = vunpack.c.h.b16 %v456
        %v586 = vunpack.c.l.b16 %v457
        %v587 = vunpack.c.h.b16 %v457
        %v588 = vunpack.c.l.b16 %v458
        %v589 = vunpack.c.h.b16 %v458
        %v590 = vunpack.c.l.b16 %v459
        %v591 = vunpack.c.h.b16 %v459
        %v592 = vunpack.c.l.b16 %v460
        %v593 = vunpack.c.h.b16 %v460
        %v594 = vunpack.c.l.b16 %v461
        %v595 = vunpack.c.h.b16 %v461
        %v596 = vunpack.c.l.b16 %v462
        %v597 = vunpack.c.h.b16 %v462
        %v598 = vunpack.c.l.b16 %v463
        %v599 = vunpack.c.h.b16 %v463
        %v600 = vunpack.c.l.b16 %v464
        %v601 = vunpack.c.h.b16 %v464
        %v602 = vunpack.c.l.b16 %v465
        %v603 = vunpack.c.h.b16 %v465
        %v604 = vunpack.c.l.b16 %v466
        %v605 = vunpack.c.h.b16 %v466
        %v606 = vunpack.c.l.b16 %v467
        %v607 = vunpack.c.h.b16 %v467
        %v608 = vunpack.c.l.b16 %v468
        %v609 = vunpack.c.h.b16 %v468
        %v610 = vunpack.c.l.b16 %v469
        %v611 = vunpack.c.h.b16 %v469
        %v612 = vunpack.c.l.b16 %v470
        %v613 = vunpack.c.h.b16 %v470
        %v614 = vunpack.c.l.b16 %v471
        %v615 = vunpack.c.h.b16 %v471
        %v616 = vunpack.c.l.b16 %v472
        %v617 = vunpack.c.h.b16 %v472
        %v618 = vunpack.c.l.b16 %v473
        %v619 = vunpack.c.h.b16 %v473
        %v620 = vunpack.c.l.b16 %v474
        %v621 = vunpack.c.h.b16 %v474
        %v622 = vunpack.c.l.b16 %v475
        %v623 = vunpack.c.h.b16 %v475
        %v624 = vunpack.c.l.b16 %v476
        %v625 = vunpack.c.h.b16 %v476
        %v626 = vunpack.c.l.b16 %v477
        %v627 = vunpack.c.h.b16 %v477
        %v628 = vunpack.c.l.b16 %v478
        %v629 = vunpack.c.h.b16 %v478
        %v630 = vunpack.c.l.b16 %v479
        %v631 = vunpack.c.h.b16 %v479
        %v632 = vunpack.c.l.b16 %v480
        %v633 = vunpack.c.h.b16 %v480
        %v634 = vunpack.c.l.b16 %v481
        %v635 = vunpack.c.h.b16 %v481
        %v636 = vunpack.c.l.b16 %v482
        %v637 = vunpack.c.h.b16 %v482
        %v638 = vunpack.c.l.b16 %v483
        %v639 = vunpack.c.h.b16 %v483
        %v640 = vunpack.c.l.b16 %v484
        %v641 = vunpack.c.h.b16 %v484
        %v642 = vunpack.c.l.b16 %v485
        %v643 = vunpack.c.h.b16 %v485
        %v644 = vpack.c.b16 %v582, %v580
        %v645 = vpack.c.b16 %v583, %v581
        %v646 = vpack.c.b16 %v586, %v584
        %v647 = vpack.c.b16 %v587, %v585
        %v648 = vpack.c.b16 %v590, %v588
        %v649 = vpack.c.b16 %v591, %v589
        %v650 = vpack.c.b16 %v594, %v592
        %v651 = vpack.c.b16 %v595, %v593
        %v652 = vpack.c.b16 %v598, %v596
        %v653 = vpack.c.b16 %v599, %v597
        %v654 = vpack.c.b16 %v602, %v600
        %v655 = vpack.c.b16 %v603, %v601
        %v656 = vpack.c.b16 %v606, %v604
        %v657 = vpack.c.b16 %v607, %v605
        %v658 = vpack.c.b16 %v610, %v608
        %v659 = vpack.c.b16 %v611, %v609
        %v660 = vpack.c.b16 %v614, %v612
        %v661 = vpack.c.b16 %v615, %v613
        %v662 = vpack.c.b16 %v618, %v616
        %v663 = vpack.c.b16 %v619, %v617
        %v664 = vpack.c.b16 %v622, %v620
        %v665 = vpack.c.b16 %v623, %v621
        %v666 = vpack.c.b16 %v626, %v624
        %v667 = vpack.c.b16 %v627, %v625
        %v668 = vpack.c.b16 %v630, %v628
        %v669 = vpack.c.b16 %v631, %v629
        %v670 = vpack.c.b16 %v634, %v632
        %v671 = vpack.c.b16 %v635, %v633
        %v672 = vpack.c.b16 %v638, %v636
        %v673 = vpack.c.b16 %v639, %v637
        %v674 = vpack.c.b16 %v642, %v640
        %v675 = vpack.c.b16 %v643, %v641
        %708 = vmatprep.subr.bf16.mxu0 %v659
        %709 = vmatpush1.bf16.msra.mxu0 %v658
        %710 = vmatprep.subr.bf16.mxu0 %v657
        %711 = vmatpush1.bf16.msra.mxu0 %v656
        %712 = vmatprep.subr.bf16.mxu0 %v655
        %713 = vmatpush1.bf16.msra.mxu0 %v654
        %714 = vmatprep.subr.bf16.mxu0 %v653
        %715 = vmatpush1.bf16.msra.mxu0 %v652
        %716 = vmatprep.subr.bf16.mxu0 %v651
        %717 = vmatpush1.bf16.msra.mxu0 %v650
        %718 = vmatprep.subr.bf16.mxu0 %v649
        %719 = vmatpush1.bf16.msra.mxu0 %v648
        %720 = vmatprep.subr.bf16.mxu0 %v647
        %721 = vmatpush1.bf16.msra.mxu0 %v646
        %722 = vmatprep.subr.bf16.mxu0 %v645
        %723 = vmatpush1.bf16.msra.mxu0 %v644
        %724 = vmatprep.subr.bf16.mxu0 %v675
        %725 = vmatpush2.bf16.msra.mxu0 %v674
        %726 = vmatprep.subr.bf16.mxu0 %v673
        %727 = vmatpush2.bf16.msra.mxu0 %v672
        %728 = vmatprep.subr.bf16.mxu0 %v671
        %729 = vmatpush2.bf16.msra.mxu0 %v670
        %730 = vmatprep.subr.bf16.mxu0 %v669
        %731 = vmatpush2.bf16.msra.mxu0 %v668
        %732 = vmatprep.subr.bf16.mxu0 %v667
        %733 = vmatpush2.bf16.msra.mxu0 %v666
        %734 = vmatprep.subr.bf16.mxu0 %v665
        %735 = vmatpush2.bf16.msra.mxu0 %v664
        %736 = vmatprep.subr.bf16.mxu0 %v663
        %737 = vmatpush2.bf16.msra.mxu0 %v662
        %738 = vmatprep.subr.bf16.mxu0 %v661
        %739 = vmatpush2.bf16.msra.mxu0 %v660
        %740 = vmatprep.mubr.bf16.mxu0 %v529
        %741 = vmatmul.mubr.bf16.gmra.mxu0 %v528
        %v742 = vpop.f32.mrf.mxu0
        %v743 = vadd.f32 %v491, %v742
        %v744 = vpop.f32.mrf.mxu0
        %v745 = vadd.f32 %v495, %v744
        %v746 = vpop.f32.mrf.mxu0
        %v747 = vadd.f32 %v491, %v746
        %v748 = vpop.f32.mrf.mxu0
        %v749 = vadd.f32 %v495, %v748
        %750 = vmatprep.mubr.bf16.mxu0 %v531
        %751 = vmatmul.mubr.bf16.gmra.mxu0 %v530
        %v752 = vpop.f32.mrf.mxu0
        %v753 = vadd.f32 %v491, %v752
        %v754 = vpop.f32.mrf.mxu0
        %v755 = vadd.f32 %v495, %v754
        %v756 = vpop.f32.mrf.mxu0
        %v757 = vadd.f32 %v491, %v756
        %v758 = vpop.f32.mrf.mxu0
        %v759 = vadd.f32 %v495, %v758
        %760 = vmatprep.mubr.bf16.mxu0 %v533
        %761 = vmatmul.mubr.bf16.gmra.mxu0 %v532
        %v762 = vpop.f32.mrf.mxu0
        %v763 = vadd.f32 %v491, %v762
        %v764 = vpop.f32.mrf.mxu0
        %v765 = vadd.f32 %v495, %v764
        %v766 = vpop.f32.mrf.mxu0
        %v767 = vadd.f32 %v491, %v766
        %v768 = vpop.f32.mrf.mxu0
        %v769 = vadd.f32 %v495, %v768
        %770 = vmatprep.mubr.bf16.mxu0 %v535
        %771 = vmatmul.mubr.bf16.gmra.mxu0 %v534
        %v772 = vpop.f32.mrf.mxu0
        %v773 = vadd.f32 %v491, %v772
        %v774 = vpop.f32.mrf.mxu0
        %v775 = vadd.f32 %v495, %v774
        %v776 = vpop.f32.mrf.mxu0
        %v777 = vadd.f32 %v491, %v776
        %v778 = vpop.f32.mrf.mxu0
        %v779 = vadd.f32 %v495, %v778
        %780 = vmatprep.mubr.bf16.mxu0 %v537
        %781 = vmatmul.mubr.bf16.gmra.mxu0 %v536
        %v782 = vpop.f32.mrf.mxu0
        %v783 = vadd.f32 %v491, %v782
        %v784 = vpop.f32.mrf.mxu0
        %v785 = vadd.f32 %v495, %v784
        %v786 = vpop.f32.mrf.mxu0
        %v787 = vadd.f32 %v491, %v786
        %v788 = vpop.f32.mrf.mxu0
        %v789 = vadd.f32 %v495, %v788
        %790 = vdwg.mxu0
        %v791 = vld [vmem:[%s391] sm:$0xff]
        %v792 = vld [vmem:[%s391 + $0x8] sm:$0xff]
        %v793 = vld [vmem:[%s391 + $0x10] sm:$0xff]
        %v794 = vld [vmem:[%s391 + $0x18] sm:$0xff]
        %v795 = vld [vmem:[%s391 + $0x20] sm:$0xff]
        %v796 = vld [vmem:[%s391 + $0x28] sm:$0xff]
        %v797 = vld [vmem:[%s391 + $0x30] sm:$0xff]
        %v798 = vld [vmem:[%s391 + $0x38] sm:$0xff]
        %v799 = vld [vmem:[%s391 + $0x40] sm:$0xff]
        %v800 = vld [vmem:[%s391 + $0x48] sm:$0xff]
        %v801 = vld [vmem:[%s391 + $0x50] sm:$0xff]
        %v802 = vld [vmem:[%s391 + $0x58] sm:$0xff]
        %v803 = vld [vmem:[%s391 + $0x60] sm:$0xff]
        %v804 = vld [vmem:[%s391 + $0x68] sm:$0xff]
        %v805 = vld [vmem:[%s391 + $0x70] sm:$0xff]
        %v806 = vld [vmem:[%s391 + $0x78] sm:$0xff]
        %v807 = vld [vmem:[%s391 + $0x80] sm:$0xff]
        %v808 = vld [vmem:[%s391 + $0x88] sm:$0xff]
        %v809 = vld [vmem:[%s391 + $0x90] sm:$0xff]
        %v810 = vld [vmem:[%s391 + $0x98] sm:$0xff]
        %v811 = vld [vmem:[%s391 + $0xa0] sm:$0xff]
        %v812 = vld [vmem:[%s391 + $0xa8] sm:$0xff]
        %v813 = vld [vmem:[%s391 + $0xb0] sm:$0xff]
        %v814 = vld [vmem:[%s391 + $0xb8] sm:$0xff]
        %v815 = vld [vmem:[%s391 + $0xc0] sm:$0xff]
        %v816 = vld [vmem:[%s391 + $0xc8] sm:$0xff]
        %v817 = vld [vmem:[%s391 + $0xd0] sm:$0xff]
        %v818 = vld [vmem:[%s391 + $0xd8] sm:$0xff]
        %v819 = vld [vmem:[%s391 + $0xe0] sm:$0xff]
        %v820 = vld [vmem:[%s391 + $0xe8] sm:$0xff]
        %v821 = vld [vmem:[%s391 + $0xf0] sm:$0xff]
        %v822 = vld [vmem:[%s391 + $0xf8] sm:$0xff]
        %v823 = vld [vmem:[%s396] sm:$0x3]
        %v825 = vlaneseq
        %v826 = vshrl.u32 %v825, 7
        %v827 = vsub.s32 0, %v826
        %v828 = vrot.slane %v823, %v827
        %v829 = vlaneseq
        %v830 = vshrl.u32 %v829, 7
        %v831 = vsub.s32 1, %v830
        %v832 = vrot.slane %v823, %v831
        %v867 = vunpack.c.l.b16 %v791
        %v868 = vunpack.c.h.b16 %v791
        %v869 = vunpack.c.l.b16 %v792
        %v870 = vunpack.c.h.b16 %v792
        %v871 = vunpack.c.l.b16 %v793
        %v872 = vunpack.c.h.b16 %v793
        %v873 = vunpack.c.l.b16 %v794
        %v874 = vunpack.c.h.b16 %v794
        %v875 = vunpack.c.l.b16 %v795
        %v876 = vunpack.c.h.b16 %v795
        %v877 = vunpack.c.l.b16 %v796
        %v878 = vunpack.c.h.b16 %v796
        %v879 = vunpack.c.l.b16 %v797
        %v880 = vunpack.c.h.b16 %v797
        %v881 = vunpack.c.l.b16 %v798
        %v882 = vunpack.c.h.b16 %v798
        %v883 = vunpack.c.l.b16 %v799
        %v884 = vunpack.c.h.b16 %v799
        %v885 = vunpack.c.l.b16 %v800
        %v886 = vunpack.c.h.b16 %v800
        %v887 = vunpack.c.l.b16 %v801
        %v888 = vunpack.c.h.b16 %v801
        %v889 = vunpack.c.l.b16 %v802
        %v890 = vunpack.c.h.b16 %v802
        %v891 = vunpack.c.l.b16 %v803
        %v892 = vunpack.c.h.b16 %v803
        %v893 = vunpack.c.l.b16 %v804
        %v894 = vunpack.c.h.b16 %v804
        %v895 = vunpack.c.l.b16 %v805
        %v896 = vunpack.c.h.b16 %v805
        %v897 = vunpack.c.l.b16 %v806
        %v898 = vunpack.c.h.b16 %v806
        %v899 = vunpack.c.l.b16 %v807
        %v900 = vunpack.c.h.b16 %v807
        %v901 = vunpack.c.l.b16 %v808
        %v902 = vunpack.c.h.b16 %v808
        %v903 = vunpack.c.l.b16 %v809
        %v904 = vunpack.c.h.b16 %v809
        %v905 = vunpack.c.l.b16 %v810
        %v906 = vunpack.c.h.b16 %v810
        %v907 = vunpack.c.l.b16 %v811
        %v908 = vunpack.c.h.b16 %v811
        %v909 = vunpack.c.l.b16 %v812
        %v910 = vunpack.c.h.b16 %v812
        %v911 = vunpack.c.l.b16 %v813
        %v912 = vunpack.c.h.b16 %v813
        %v913 = vunpack.c.l.b16 %v814
        %v914 = vunpack.c.h.b16 %v814
        %v915 = vunpack.c.l.b16 %v815
        %v916 = vunpack.c.h.b16 %v815
        %v917 = vunpack.c.l.b16 %v816
        %v918 = vunpack.c.h.b16 %v816
        %v919 = vunpack.c.l.b16 %v817
        %v920 = vunpack.c.h.b16 %v817
        %v921 = vunpack.c.l.b16 %v818
        %v922 = vunpack.c.h.b16 %v818
        %v923 = vunpack.c.l.b16 %v819
        %v924 = vunpack.c.h.b16 %v819
        %v925 = vunpack.c.l.b16 %v820
        %v926 = vunpack.c.h.b16 %v820
        %v927 = vunpack.c.l.b16 %v821
        %v928 = vunpack.c.h.b16 %v821
        %v929 = vunpack.c.l.b16 %v822
        %v930 = vunpack.c.h.b16 %v822
        %v931 = vpack.c.b16 %v869, %v867
        %v932 = vpack.c.b16 %v870, %v868
        %v933 = vpack.c.b16 %v873, %v871
        %v934 = vpack.c.b16 %v874, %v872
        %v935 = vpack.c.b16 %v877, %v875
        %v936 = vpack.c.b16 %v878, %v876
        %v937 = vpack.c.b16 %v881, %v879
        %v938 = vpack.c.b16 %v882, %v880
        %v939 = vpack.c.b16 %v885, %v883
        %v940 = vpack.c.b16 %v886, %v884
        %v941 = vpack.c.b16 %v889, %v887
        %v942 = vpack.c.b16 %v890, %v888
        %v943 = vpack.c.b16 %v893, %v891
        %v944 = vpack.c.b16 %v894, %v892
        %v945 = vpack.c.b16 %v897, %v895
        %v946 = vpack.c.b16 %v898, %v896
        %v947 = vpack.c.b16 %v901, %v899
        %v948 = vpack.c.b16 %v902, %v900
        %v949 = vpack.c.b16 %v905, %v903
        %v950 = vpack.c.b16 %v906, %v904
        %v951 = vpack.c.b16 %v909, %v907
        %v952 = vpack.c.b16 %v910, %v908
        %v953 = vpack.c.b16 %v913, %v911
        %v954 = vpack.c.b16 %v914, %v912
        %v955 = vpack.c.b16 %v917, %v915
        %v956 = vpack.c.b16 %v918, %v916
        %v957 = vpack.c.b16 %v921, %v919
        %v958 = vpack.c.b16 %v922, %v920
        %v959 = vpack.c.b16 %v925, %v923
        %v960 = vpack.c.b16 %v926, %v924
        %v961 = vpack.c.b16 %v929, %v927
        %v962 = vpack.c.b16 %v930, %v928
        %995 = vmatprep.subr.bf16.mxu0 %v946
        %996 = vmatpush1.bf16.msra.mxu0 %v945
        %997 = vmatprep.subr.bf16.mxu0 %v944
        %998 = vmatpush1.bf16.msra.mxu0 %v943
        %999 = vmatprep.subr.bf16.mxu0 %v942
        %1000 = vmatpush1.bf16.msra.mxu0 %v941
        %1001 = vmatprep.subr.bf16.mxu0 %v940
        %1002 = vmatpush1.bf16.msra.mxu0 %v939
        %1003 = vmatprep.subr.bf16.mxu0 %v938
        %1004 = vmatpush1.bf16.msra.mxu0 %v937
        %1005 = vmatprep.subr.bf16.mxu0 %v936
        %1006 = vmatpush1.bf16.msra.mxu0 %v935
        %1007 = vmatprep.subr.bf16.mxu0 %v934
        %1008 = vmatpush1.bf16.msra.mxu0 %v933
        %1009 = vmatprep.subr.bf16.mxu0 %v932
        %1010 = vmatpush1.bf16.msra.mxu0 %v931
        %1011 = vmatprep.subr.bf16.mxu0 %v962
        %1012 = vmatpush2.bf16.msra.mxu0 %v961
        %1013 = vmatprep.subr.bf16.mxu0 %v960
        %1014 = vmatpush2.bf16.msra.mxu0 %v959
        %1015 = vmatprep.subr.bf16.mxu0 %v958
        %1016 = vmatpush2.bf16.msra.mxu0 %v957
        %1017 = vmatprep.subr.bf16.mxu0 %v956
        %1018 = vmatpush2.bf16.msra.mxu0 %v955
        %1019 = vmatprep.subr.bf16.mxu0 %v954
        %1020 = vmatpush2.bf16.msra.mxu0 %v953
        %1021 = vmatprep.subr.bf16.mxu0 %v952
        %1022 = vmatpush2.bf16.msra.mxu0 %v951
        %1023 = vmatprep.subr.bf16.mxu0 %v950
        %1024 = vmatpush2.bf16.msra.mxu0 %v949
        %1025 = vmatprep.subr.bf16.mxu0 %v948
        %1026 = vmatpush2.bf16.msra.mxu0 %v947
        %1027 = vmatprep.mubr.bf16.mxu0 %v529
        %1028 = vmatmul.mubr.bf16.gmra.mxu0 %v528
        %v1029 = vpop.f32.mrf.mxu0
        %v1030 = vadd.f32 %v828, %v1029
        %v1031 = vpop.f32.mrf.mxu0
        %v1032 = vadd.f32 %v832, %v1031
        %v1033 = vpop.f32.mrf.mxu0
        %v1034 = vadd.f32 %v828, %v1033
        %v1035 = vpop.f32.mrf.mxu0
        %v1036 = vadd.f32 %v832, %v1035
        %1037 = vmatprep.mubr.bf16.mxu0 %v531
        %1038 = vmatmul.mubr.bf16.gmra.mxu0 %v530
        %v1039 = vpop.f32.mrf.mxu0
        %v1040 = vadd.f32 %v828, %v1039
        %v1041 = vpop.f32.mrf.mxu0
        %v1042 = vadd.f32 %v832, %v1041
        %v1043 = vpop.f32.mrf.mxu0
        %v1044 = vadd.f32 %v828, %v1043
        %v1045 = vpop.f32.mrf.mxu0
        %v1046 = vadd.f32 %v832, %v1045
        %1047 = vmatprep.mubr.bf16.mxu0 %v533
        %1048 = vmatmul.mubr.bf16.gmra.mxu0 %v532
        %v1049 = vpop.f32.mrf.mxu0
        %v1050 = vadd.f32 %v828, %v1049
        %v1051 = vpop.f32.mrf.mxu0
        %v1052 = vadd.f32 %v832, %v1051
        %v1053 = vpop.f32.mrf.mxu0
        %v1054 = vadd.f32 %v828, %v1053
        %v1055 = vpop.f32.mrf.mxu0
        %v1056 = vadd.f32 %v832, %v1055
        %1057 = vmatprep.mubr.bf16.mxu0 %v535
        %1058 = vmatmul.mubr.bf16.gmra.mxu0 %v534
        %v1059 = vpop.f32.mrf.mxu0
        %v1060 = vadd.f32 %v828, %v1059
        %v1061 = vpop.f32.mrf.mxu0
        %v1062 = vadd.f32 %v832, %v1061
        %v1063 = vpop.f32.mrf.mxu0
        %v1064 = vadd.f32 %v828, %v1063
        %v1065 = vpop.f32.mrf.mxu0
        %v1066 = vadd.f32 %v832, %v1065
        %1067 = vmatprep.mubr.bf16.mxu0 %v537
        %1068 = vmatmul.mubr.bf16.gmra.mxu0 %v536
        %v1069 = vpop.f32.mrf.mxu0
        %v1070 = vadd.f32 %v828, %v1069
        %v1071 = vpop.f32.mrf.mxu0
        %v1072 = vadd.f32 %v832, %v1071
        %v1073 = vpop.f32.mrf.mxu0
        %v1074 = vadd.f32 %v828, %v1073
        %v1075 = vpop.f32.mrf.mxu0
        %v1076 = vadd.f32 %v832, %v1075
        %1077 = vdwg.mxu0
        %v1078 = vxor.u32 %v743, 2147483648
        %v1079 = vxor.u32 %v745, 2147483648
        %v1080 = vxor.u32 %v747, 2147483648
        %v1081 = vxor.u32 %v749, 2147483648
        %v1082 = vxor.u32 %v753, 2147483648
        %v1083 = vxor.u32 %v755, 2147483648
        %v1084 = vxor.u32 %v757, 2147483648
        %v1085 = vxor.u32 %v759, 2147483648
        %v1086 = vxor.u32 %v763, 2147483648
        %v1087 = vxor.u32 %v765, 2147483648
        %v1088 = vxor.u32 %v767, 2147483648
        %v1089 = vxor.u32 %v769, 2147483648
        %v1090 = vxor.u32 %v773, 2147483648
        %v1091 = vxor.u32 %v775, 2147483648
        %v1092 = vxor.u32 %v777, 2147483648
        %v1093 = vxor.u32 %v779, 2147483648
        %v1094 = vxor.u32 %v783, 2147483648
        %v1095 = vxor.u32 %v785, 2147483648
        %v1096 = vxor.u32 %v787, 2147483648
        %v1097 = vxor.u32 %v789, 2147483648
        %v1098 = vmul.f32 %v1078, 1.442695
        %v1099 = vpow.pop %v1098
        %v1100 = vmul.f32 %v1079, 1.442695
        %v1101 = vpow.pop %v1100
        %v1102 = vmul.f32 %v1080, 1.442695
        %v1103 = vpow.pop %v1102
        %v1104 = vmul.f32 %v1081, 1.442695
        %v1105 = vpow.pop %v1104
        %v1106 = vmul.f32 %v1082, 1.442695
        %v1107 = vpow.pop %v1106
        %v1108 = vmul.f32 %v1083, 1.442695
        %v1109 = vpow.pop %v1108
        %v1110 = vmul.f32 %v1084, 1.442695
        %v1111 = vpow.pop %v1110
        %v1112 = vmul.f32 %v1085, 1.442695
        %v1113 = vpow.pop %v1112
        %v1114 = vmul.f32 %v1086, 1.442695
        %v1115 = vpow.pop %v1114
        %v1116 = vmul.f32 %v1087, 1.442695
        %v1117 = vpow.pop %v1116
        %v1118 = vmul.f32 %v1088, 1.442695
        %v1119 = vpow.pop %v1118
        %v1120 = vmul.f32 %v1089, 1.442695
        %v1121 = vpow.pop %v1120
        %v1122 = vmul.f32 %v1090, 1.442695
        %v1123 = vpow.pop %v1122
        %v1124 = vmul.f32 %v1091, 1.442695
        %v1125 = vpow.pop %v1124
        %v1126 = vmul.f32 %v1092, 1.442695
        %v1127 = vpow.pop %v1126
        %v1128 = vmul.f32 %v1093, 1.442695
        %v1129 = vpow.pop %v1128
        %v1130 = vmul.f32 %v1094, 1.442695
        %v1131 = vpow.pop %v1130
        %v1132 = vmul.f32 %v1095, 1.442695
        %v1133 = vpow.pop %v1132
        %v1134 = vmul.f32 %v1096, 1.442695
        %v1135 = vpow.pop %v1134
        %v1136 = vmul.f32 %v1097, 1.442695
        %v1137 = vpow.pop %v1136
        %v1138 = vadd.f32 %v1099, 1.0
        %v1139 = vadd.f32 %v1101, 1.0
        %v1140 = vadd.f32 %v1103, 1.0
        %v1141 = vadd.f32 %v1105, 1.0
        %v1142 = vadd.f32 %v1107, 1.0
        %v1143 = vadd.f32 %v1109, 1.0
        %v1144 = vadd.f32 %v1111, 1.0
        %v1145 = vadd.f32 %v1113, 1.0
        %v1146 = vadd.f32 %v1115, 1.0
        %v1147 = vadd.f32 %v1117, 1.0
        %v1148 = vadd.f32 %v1119, 1.0
        %v1149 = vadd.f32 %v1121, 1.0
        %v1150 = vadd.f32 %v1123, 1.0
        %v1151 = vadd.f32 %v1125, 1.0
        %v1152 = vadd.f32 %v1127, 1.0
        %v1153 = vadd.f32 %v1129, 1.0
        %v1154 = vadd.f32 %v1131, 1.0
        %v1155 = vadd.f32 %v1133, 1.0
        %v1156 = vadd.f32 %v1135, 1.0
        %v1157 = vadd.f32 %v1137, 1.0
        %v1158 = vrcp.pop %v1138
        %v1159 = vmul.f32 1.0, %v1158
        %v1160 = vrcp.pop %v1139
        %v1161 = vmul.f32 1.0, %v1160
        %v1162 = vrcp.pop %v1140
        %v1163 = vmul.f32 1.0, %v1162
        %v1164 = vrcp.pop %v1141
        %v1165 = vmul.f32 1.0, %v1164
        %v1166 = vrcp.pop %v1142
        %v1167 = vmul.f32 1.0, %v1166
        %v1168 = vrcp.pop %v1143
        %v1169 = vmul.f32 1.0, %v1168
        %v1170 = vrcp.pop %v1144
        %v1171 = vmul.f32 1.0, %v1170
        %v1172 = vrcp.pop %v1145
        %v1173 = vmul.f32 1.0, %v1172
        %v1174 = vrcp.pop %v1146
        %v1175 = vmul.f32 1.0, %v1174
        %v1176 = vrcp.pop %v1147
        %v1177 = vmul.f32 1.0, %v1176
        %v1178 = vrcp.pop %v1148
        %v1179 = vmul.f32 1.0, %v1178
        %v1180 = vrcp.pop %v1149
        %v1181 = vmul.f32 1.0, %v1180
        %v1182 = vrcp.pop %v1150
        %v1183 = vmul.f32 1.0, %v1182
        %v1184 = vrcp.pop %v1151
        %v1185 = vmul.f32 1.0, %v1184
        %v1186 = vrcp.pop %v1152
        %v1187 = vmul.f32 1.0, %v1186
        %v1188 = vrcp.pop %v1153
        %v1189 = vmul.f32 1.0, %v1188
        %v1190 = vrcp.pop %v1154
        %v1191 = vmul.f32 1.0, %v1190
        %v1192 = vrcp.pop %v1155
        %v1193 = vmul.f32 1.0, %v1192
        %v1194 = vrcp.pop %v1156
        %v1195 = vmul.f32 1.0, %v1194
        %v1196 = vrcp.pop %v1157
        %v1197 = vmul.f32 1.0, %v1196
        %v1198 = vmul.f32 %v743, %v1159
        %v1199 = vmul.f32 %v745, %v1161
        %v1200 = vmul.f32 %v747, %v1163
        %v1201 = vmul.f32 %v749, %v1165
        %v1202 = vmul.f32 %v753, %v1167
        %v1203 = vmul.f32 %v755, %v1169
        %v1204 = vmul.f32 %v757, %v1171
        %v1205 = vmul.f32 %v759, %v1173
        %v1206 = vmul.f32 %v763, %v1175
        %v1207 = vmul.f32 %v765, %v1177
        %v1208 = vmul.f32 %v767, %v1179
        %v1209 = vmul.f32 %v769, %v1181
        %v1210 = vmul.f32 %v773, %v1183
        %v1211 = vmul.f32 %v775, %v1185
        %v1212 = vmul.f32 %v777, %v1187
        %v1213 = vmul.f32 %v779, %v1189
        %v1214 = vmul.f32 %v783, %v1191
        %v1215 = vmul.f32 %v785, %v1193
        %v1216 = vmul.f32 %v787, %v1195
        %v1217 = vmul.f32 %v789, %v1197
        %v1218 = vmul.f32 %v1198, %v1030
        %v1219 = vmul.f32 %v1199, %v1032
        %v1220 = vmul.f32 %v1200, %v1034
        %v1221 = vmul.f32 %v1201, %v1036
        %v1222 = vmul.f32 %v1202, %v1040
        %v1223 = vmul.f32 %v1203, %v1042
        %v1224 = vmul.f32 %v1204, %v1044
        %v1225 = vmul.f32 %v1205, %v1046
        %v1226 = vmul.f32 %v1206, %v1050
        %v1227 = vmul.f32 %v1207, %v1052
        %v1228 = vmul.f32 %v1208, %v1054
        %v1229 = vmul.f32 %v1209, %v1056
        %v1230 = vmul.f32 %v1210, %v1060
        %v1231 = vmul.f32 %v1211, %v1062
        %v1232 = vmul.f32 %v1212, %v1064
        %v1233 = vmul.f32 %v1213, %v1066
        %v1234 = vmul.f32 %v1214, %v1070
        %v1235 = vmul.f32 %v1215, %v1072
        %v1236 = vmul.f32 %v1216, %v1074
        %v1237 = vmul.f32 %v1217, %v1076
        %v1238 = vld [vmem:[%s404] sm:$0xff]
        %v1239 = vld [vmem:[%s404 + $0x8] sm:$0xff]
        %v1240 = vld [vmem:[%s404 + $0x10] sm:$0xff]
        %v1241 = vld [vmem:[%s404 + $0x18] sm:$0xff]
        %v1242 = vld [vmem:[%s404 + $0x20] sm:$0xff]
        %v1243 = vld [vmem:[%s404 + $0x28] sm:$0xff]
        %v1244 = vld [vmem:[%s404 + $0x30] sm:$0xff]
        %v1245 = vld [vmem:[%s404 + $0x38] sm:$0xff]
        %v1246 = vld [vmem:[%s404 + $0x40] sm:$0xff]
        %v1247 = vld [vmem:[%s404 + $0x48] sm:$0xff]
        %v1248 = vld [vmem:[%s404 + $0x50] sm:$0xff]
        %v1249 = vld [vmem:[%s404 + $0x58] sm:$0xff]
        %v1250 = vld [vmem:[%s404 + $0x60] sm:$0xff]
        %v1251 = vld [vmem:[%s404 + $0x68] sm:$0xff]
        %v1252 = vld [vmem:[%s404 + $0x70] sm:$0xff]
        %v1253 = vld [vmem:[%s404 + $0x78] sm:$0xff]
        %v1254 = vld [vmem:[%s404 + $0x80] sm:$0xff]
        %v1255 = vld [vmem:[%s404 + $0x88] sm:$0xff]
        %v1256 = vld [vmem:[%s404 + $0x90] sm:$0xff]
        %v1257 = vld [vmem:[%s404 + $0x98] sm:$0xff]
        %v1258 = vpack.c.bf16 %v1220, %v1218
        %v1259 = vpack.c.bf16 %v1221, %v1219
        %v1260 = vpack.c.bf16 %v1224, %v1222
        %v1261 = vpack.c.bf16 %v1225, %v1223
        %v1262 = vpack.c.bf16 %v1228, %v1226
        %v1263 = vpack.c.bf16 %v1229, %v1227
        %v1264 = vpack.c.bf16 %v1232, %v1230
        %v1265 = vpack.c.bf16 %v1233, %v1231
        %v1266 = vpack.c.bf16 %v1236, %v1234
        %v1267 = vpack.c.bf16 %v1237, %v1235
        %v1268 = vld [vmem:[#allocation2] sm:$0xff]
        %v1269 = vld [vmem:[#allocation2 + $0x8] sm:$0xff]
        %v1270 = vld [vmem:[#allocation2 + $0x10] sm:$0xff]
        %v1271 = vld [vmem:[#allocation2 + $0x18] sm:$0xff]
        %v1272 = vld [vmem:[#allocation2 + $0x20] sm:$0xff]
        %v1273 = vld [vmem:[#allocation2 + $0x28] sm:$0xff]
        %v1274 = vld [vmem:[#allocation2 + $0x30] sm:$0xff]
        %v1275 = vld [vmem:[#allocation2 + $0x38] sm:$0xff]
        %v1276 = vld [vmem:[#allocation2 + $0x40] sm:$0xff]
        %v1277 = vld [vmem:[#allocation2 + $0x48] sm:$0xff]
        %v1278 = vld [vmem:[#allocation2 + $0x50] sm:$0xff]
        %v1279 = vld [vmem:[#allocation2 + $0x58] sm:$0xff]
        %v1280 = vld [vmem:[#allocation2 + $0x60] sm:$0xff]
        %v1281 = vld [vmem:[#allocation2 + $0x68] sm:$0xff]
        %v1282 = vld [vmem:[#allocation2 + $0x70] sm:$0xff]
        %v1283 = vld [vmem:[#allocation2 + $0x78] sm:$0xff]
        %v1284 = vld [vmem:[#allocation2 + $0x80] sm:$0xff]
        %v1285 = vld [vmem:[#allocation2 + $0x88] sm:$0xff]
        %v1286 = vld [vmem:[#allocation2 + $0x90] sm:$0xff]
        %v1287 = vld [vmem:[#allocation2 + $0x98] sm:$0xff]
        %v1288 = vld [vmem:[#allocation2 + $0xa0] sm:$0xff]
        %v1289 = vld [vmem:[#allocation2 + $0xa8] sm:$0xff]
        %v1290 = vld [vmem:[#allocation2 + $0xb0] sm:$0xff]
        %v1291 = vld [vmem:[#allocation2 + $0xb8] sm:$0xff]
        %v1292 = vld [vmem:[#allocation2 + $0xc0] sm:$0xff]
        %v1293 = vld [vmem:[#allocation2 + $0xc8] sm:$0xff]
        %v1294 = vld [vmem:[#allocation2 + $0xd0] sm:$0xff]
        %v1295 = vld [vmem:[#allocation2 + $0xd8] sm:$0xff]
        %v1296 = vld [vmem:[#allocation2 + $0xe0] sm:$0xff]
        %v1297 = vld [vmem:[#allocation2 + $0xe8] sm:$0xff]
        %v1298 = vld [vmem:[#allocation2 + $0xf0] sm:$0xff]
        %v1299 = vld [vmem:[#allocation2 + $0xf8] sm:$0xff]
        %v1332 = vunpack.c.l.b16 %v1268
        %v1333 = vunpack.c.h.b16 %v1268
        %v1334 = vunpack.c.l.b16 %v1269
        %v1335 = vunpack.c.h.b16 %v1269
        %v1336 = vunpack.c.l.b16 %v1270
        %v1337 = vunpack.c.h.b16 %v1270
        %v1338 = vunpack.c.l.b16 %v1271
        %v1339 = vunpack.c.h.b16 %v1271
        %v1340 = vunpack.c.l.b16 %v1272
        %v1341 = vunpack.c.h.b16 %v1272
        %v1342 = vunpack.c.l.b16 %v1273
        %v1343 = vunpack.c.h.b16 %v1273
        %v1344 = vunpack.c.l.b16 %v1274
        %v1345 = vunpack.c.h.b16 %v1274
        %v1346 = vunpack.c.l.b16 %v1275
        %v1347 = vunpack.c.h.b16 %v1275
        %v1348 = vunpack.c.l.b16 %v1276
        %v1349 = vunpack.c.h.b16 %v1276
        %v1350 = vunpack.c.l.b16 %v1277
        %v1351 = vunpack.c.h.b16 %v1277
        %v1352 = vunpack.c.l.b16 %v1278
        %v1353 = vunpack.c.h.b16 %v1278
        %v1354 = vunpack.c.l.b16 %v1279
        %v1355 = vunpack.c.h.b16 %v1279
        %v1356 = vunpack.c.l.b16 %v1280
        %v1357 = vunpack.c.h.b16 %v1280
        %v1358 = vunpack.c.l.b16 %v1281
        %v1359 = vunpack.c.h.b16 %v1281
        %v1360 = vunpack.c.l.b16 %v1282
        %v1361 = vunpack.c.h.b16 %v1282
        %v1362 = vunpack.c.l.b16 %v1283
        %v1363 = vunpack.c.h.b16 %v1283
        %v1364 = vunpack.c.l.b16 %v1284
        %v1365 = vunpack.c.h.b16 %v1284
        %v1366 = vunpack.c.l.b16 %v1285
        %v1367 = vunpack.c.h.b16 %v1285
        %v1368 = vunpack.c.l.b16 %v1286
        %v1369 = vunpack.c.h.b16 %v1286
        %v1370 = vunpack.c.l.b16 %v1287
        %v1371 = vunpack.c.h.b16 %v1287
        %v1372 = vunpack.c.l.b16 %v1288
        %v1373 = vunpack.c.h.b16 %v1288
        %v1374 = vunpack.c.l.b16 %v1289
        %v1375 = vunpack.c.h.b16 %v1289
        %v1376 = vunpack.c.l.b16 %v1290
        %v1377 = vunpack.c.h.b16 %v1290
        %v1378 = vunpack.c.l.b16 %v1291
        %v1379 = vunpack.c.h.b16 %v1291
        %v1380 = vunpack.c.l.b16 %v1292
        %v1381 = vunpack.c.h.b16 %v1292
        %v1382 = vunpack.c.l.b16 %v1293
        %v1383 = vunpack.c.h.b16 %v1293
        %v1384 = vunpack.c.l.b16 %v1294
        %v1385 = vunpack.c.h.b16 %v1294
        %v1386 = vunpack.c.l.b16 %v1295
        %v1387 = vunpack.c.h.b16 %v1295
        %v1388 = vunpack.c.l.b16 %v1296
        %v1389 = vunpack.c.h.b16 %v1296
        %v1390 = vunpack.c.l.b16 %v1297
        %v1391 = vunpack.c.h.b16 %v1297
        %v1392 = vunpack.c.l.b16 %v1298
        %v1393 = vunpack.c.h.b16 %v1298
        %v1394 = vunpack.c.l.b16 %v1299
        %v1395 = vunpack.c.h.b16 %v1299
        %v1396 = vpack.c.b16 %v1334, %v1332
        %v1397 = vpack.c.b16 %v1335, %v1333
        %v1398 = vpack.c.b16 %v1338, %v1336
        %v1399 = vpack.c.b16 %v1339, %v1337
        %v1400 = vpack.c.b16 %v1342, %v1340
        %v1401 = vpack.c.b16 %v1343, %v1341
        %v1402 = vpack.c.b16 %v1346, %v1344
        %v1403 = vpack.c.b16 %v1347, %v1345
        %v1404 = vpack.c.b16 %v1350, %v1348
        %v1405 = vpack.c.b16 %v1351, %v1349
        %v1406 = vpack.c.b16 %v1354, %v1352
        %v1407 = vpack.c.b16 %v1355, %v1353
        %v1408 = vpack.c.b16 %v1358, %v1356
        %v1409 = vpack.c.b16 %v1359, %v1357
        %v1410 = vpack.c.b16 %v1362, %v1360
        %v1411 = vpack.c.b16 %v1363, %v1361
        %v1412 = vpack.c.b16 %v1366, %v1364
        %v1413 = vpack.c.b16 %v1367, %v1365
        %v1414 = vpack.c.b16 %v1370, %v1368
        %v1415 = vpack.c.b16 %v1371, %v1369
        %v1416 = vpack.c.b16 %v1374, %v1372
        %v1417 = vpack.c.b16 %v1375, %v1373
        %v1418 = vpack.c.b16 %v1378, %v1376
        %v1419 = vpack.c.b16 %v1379, %v1377
        %v1420 = vpack.c.b16 %v1382, %v1380
        %v1421 = vpack.c.b16 %v1383, %v1381
        %v1422 = vpack.c.b16 %v1386, %v1384
        %v1423 = vpack.c.b16 %v1387, %v1385
        %v1424 = vpack.c.b16 %v1390, %v1388
        %v1425 = vpack.c.b16 %v1391, %v1389
        %v1426 = vpack.c.b16 %v1394, %v1392
        %v1427 = vpack.c.b16 %v1395, %v1393
        %1460 = vmatprep.subr.bf16.mxu0 %v1411
        %1461 = vmatpush1.bf16.msra.mxu0 %v1410
        %1462 = vmatprep.subr.bf16.mxu0 %v1409
        %1463 = vmatpush1.bf16.msra.mxu0 %v1408
        %1464 = vmatprep.subr.bf16.mxu0 %v1407
        %1465 = vmatpush1.bf16.msra.mxu0 %v1406
        %1466 = vmatprep.subr.bf16.mxu0 %v1405
        %1467 = vmatpush1.bf16.msra.mxu0 %v1404
        %1468 = vmatprep.subr.bf16.mxu0 %v1403
        %1469 = vmatpush1.bf16.msra.mxu0 %v1402
        %1470 = vmatprep.subr.bf16.mxu0 %v1401
        %1471 = vmatpush1.bf16.msra.mxu0 %v1400
        %1472 = vmatprep.subr.bf16.mxu0 %v1399
        %1473 = vmatpush1.bf16.msra.mxu0 %v1398
        %1474 = vmatprep.subr.bf16.mxu0 %v1397
        %1475 = vmatpush1.bf16.msra.mxu0 %v1396
        %1476 = vmatprep.subr.bf16.mxu0 %v1427
        %1477 = vmatpush2.bf16.msra.mxu0 %v1426
        %1478 = vmatprep.subr.bf16.mxu0 %v1425
        %1479 = vmatpush2.bf16.msra.mxu0 %v1424
        %1480 = vmatprep.subr.bf16.mxu0 %v1423
        %1481 = vmatpush2.bf16.msra.mxu0 %v1422
        %1482 = vmatprep.subr.bf16.mxu0 %v1421
        %1483 = vmatpush2.bf16.msra.mxu0 %v1420
        %1484 = vmatprep.subr.bf16.mxu0 %v1419
        %1485 = vmatpush2.bf16.msra.mxu0 %v1418
        %1486 = vmatprep.subr.bf16.mxu0 %v1417
        %1487 = vmatpush2.bf16.msra.mxu0 %v1416
        %1488 = vmatprep.subr.bf16.mxu0 %v1415
        %1489 = vmatpush2.bf16.msra.mxu0 %v1414
        %1490 = vmatprep.subr.bf16.mxu0 %v1413
        %1491 = vmatpush2.bf16.msra.mxu0 %v1412
        %1492 = vmatprep.mubr.bf16.mxu0 %v1259
        %1493 = vmatmul.mubr.bf16.gmra.mxu0 %v1258
        %v1494 = vpop.f32.mrf.mxu0
        %v1495 = vadd.f32 0.0, %v1494
        %v1496 = vpop.f32.mrf.mxu0
        %v1497 = vadd.f32 0.0, %v1496
        %v1498 = vpop.f32.mrf.mxu0
        %v1499 = vadd.f32 0.0, %v1498
        %v1500 = vpop.f32.mrf.mxu0
        %v1501 = vadd.f32 0.0, %v1500
        %1502 = vmatprep.mubr.bf16.mxu0 %v1261
        %1503 = vmatmul.mubr.bf16.gmra.mxu0 %v1260
        %v1504 = vpop.f32.mrf.mxu0
        %v1505 = vadd.f32 0.0, %v1504
        %v1506 = vpop.f32.mrf.mxu0
        %v1507 = vadd.f32 0.0, %v1506
        %v1508 = vpop.f32.mrf.mxu0
        %v1509 = vadd.f32 0.0, %v1508
        %v1510 = vpop.f32.mrf.mxu0
        %v1511 = vadd.f32 0.0, %v1510
        %1512 = vmatprep.mubr.bf16.mxu0 %v1263
        %1513 = vmatmul.mubr.bf16.gmra.mxu0 %v1262
        %v1514 = vpop.f32.mrf.mxu0
        %v1515 = vadd.f32 0.0, %v1514
        %v1516 = vpop.f32.mrf.mxu0
        %v1517 = vadd.f32 0.0, %v1516
        %v1518 = vpop.f32.mrf.mxu0
        %v1519 = vadd.f32 0.0, %v1518
        %v1520 = vpop.f32.mrf.mxu0
        %v1521 = vadd.f32 0.0, %v1520
        %1522 = vmatprep.mubr.bf16.mxu0 %v1265
        %1523 = vmatmul.mubr.bf16.gmra.mxu0 %v1264
        %v1524 = vpop.f32.mrf.mxu0
        %v1525 = vadd.f32 0.0, %v1524
        %v1526 = vpop.f32.mrf.mxu0
        %v1527 = vadd.f32 0.0, %v1526
        %v1528 = vpop.f32.mrf.mxu0
        %v1529 = vadd.f32 0.0, %v1528
        %v1530 = vpop.f32.mrf.mxu0
        %v1531 = vadd.f32 0.0, %v1530
        %1532 = vmatprep.mubr.bf16.mxu0 %v1267
        %1533 = vmatmul.mubr.bf16.gmra.mxu0 %v1266
        %v1534 = vpop.f32.mrf.mxu0
        %v1535 = vadd.f32 0.0, %v1534
        %v1536 = vpop.f32.mrf.mxu0
        %v1537 = vadd.f32 0.0, %v1536
        %v1538 = vpop.f32.mrf.mxu0
        %v1539 = vadd.f32 0.0, %v1538
        %v1540 = vpop.f32.mrf.mxu0
        %v1541 = vadd.f32 0.0, %v1540
        %1542 = vdwg.mxu0
        %v1543 = vadd.f32 %v1238, %v1495
        %v1544 = vadd.f32 %v1239, %v1497
        %v1545 = vadd.f32 %v1240, %v1499
        %v1546 = vadd.f32 %v1241, %v1501
        %v1547 = vadd.f32 %v1242, %v1505
        %v1548 = vadd.f32 %v1243, %v1507
        %v1549 = vadd.f32 %v1244, %v1509
        %v1550 = vadd.f32 %v1245, %v1511
        %v1551 = vadd.f32 %v1246, %v1515
        %v1552 = vadd.f32 %v1247, %v1517
        %v1553 = vadd.f32 %v1248, %v1519
        %v1554 = vadd.f32 %v1249, %v1521
        %v1555 = vadd.f32 %v1250, %v1525
        %v1556 = vadd.f32 %v1251, %v1527
        %v1557 = vadd.f32 %v1252, %v1529
        %v1558 = vadd.f32 %v1253, %v1531
        %v1559 = vadd.f32 %v1254, %v1535
        %v1560 = vadd.f32 %v1255, %v1537
        %v1561 = vadd.f32 %v1256, %v1539
        %v1562 = vadd.f32 %v1257, %v1541
        %1563 = vst [vmem:[%s404] sm:$0xff] %v1543
        %1564 = vst [vmem:[%s404 + $0x8] sm:$0xff] %v1544
        %1565 = vst [vmem:[%s404 + $0x10] sm:$0xff] %v1545
        %1566 = vst [vmem:[%s404 + $0x18] sm:$0xff] %v1546
        %1567 = vst [vmem:[%s404 + $0x20] sm:$0xff] %v1547
        %1568 = vst [vmem:[%s404 + $0x28] sm:$0xff] %v1548
        %1569 = vst [vmem:[%s404 + $0x30] sm:$0xff] %v1549
        %1570 = vst [vmem:[%s404 + $0x38] sm:$0xff] %v1550
        %1571 = vst [vmem:[%s404 + $0x40] sm:$0xff] %v1551
        %1572 = vst [vmem:[%s404 + $0x48] sm:$0xff] %v1552
        %1573 = vst [vmem:[%s404 + $0x50] sm:$0xff] %v1553
        %1574 = vst [vmem:[%s404 + $0x58] sm:$0xff] %v1554
        %1575 = vst [vmem:[%s404 + $0x60] sm:$0xff] %v1555
        %1576 = vst [vmem:[%s404 + $0x68] sm:$0xff] %v1556
        %1577 = vst [vmem:[%s404 + $0x70] sm:$0xff] %v1557
        %1578 = vst [vmem:[%s404 + $0x78] sm:$0xff] %v1558
        %1579 = vst [vmem:[%s404 + $0x80] sm:$0xff] %v1559
        %1580 = vst [vmem:[%s404 + $0x88] sm:$0xff] %v1560
        %1581 = vst [vmem:[%s404 + $0x90] sm:$0xff] %v1561
        %1582 = vst [vmem:[%s404 + $0x98] sm:$0xff] %v1562
        %s1583 = smul.u32 10, %s23
        %p1584 = scmp.lt.s32.totalorder %s1583, 19
        %s1585 = scalar_select %p1584, %s1583, 19
        %s1586 = smul.addr %s1585, 2
        %s1587 = smul.addr %s1586, 8
        %s1588 = scalar_lea.vmem %s7, %s1587
        // Predicated region
        $region57: #{swiglu_pallas.1} parent=47 // pred_check
          %p1589 = pneg %p226
        $region58: #{swiglu_pallas.1} parent=47 // pred_check_branch
          %1591 = sbr.rel (%p1589) target = $region60
        $region59: #{swiglu_pallas.1} parent=47 // pred_region
          %s1592 = smul.u32 10, %s23
        $region60: #{swiglu_pallas.1} parent=47 // pred_fallthru
          _
      $region48: #{swiglu_pallas.1} parent=5 // pred_fallthru
        _
      %p1593 = scmp.le.s32.totalorder 2, %s14
      // Predicated region
      $region61: #{swiglu_pallas.1} parent=5 // pred_check
        %p1594 = pneg %p1593
      $region62: #{swiglu_pallas.1} parent=5 // pred_check_branch
        %1596 = sbr.rel (%p1594) target = $region64
      $region63: #{swiglu_pallas.1} parent=5 // pred_region
        %s1597 = ssub.s32 %s14, 2
        // Predicated region
        $region65: #{swiglu_pallas.1} parent=63 // pred_check
          %p1598 = pneg %p232
        $region66: #{swiglu_pallas.1} parent=63 // pred_check_branch
          %1600 = sbr.rel (%p1598) target = $region68
        $region67: #{swiglu_pallas.1} parent=63 // pred_region
          %s1601 = smul.u32 10, %s25
          %p1602 = scmp.lt.s32.totalorder %s1601, 19
          %s1603 = scalar_select %p1602, %s1601, 19
          %s1604 = smul.addr %s1603, 2
          %s1605 = smul.addr %s1604, 8
          %s1606 = scalar_lea.vmem %s7, %s1605
        $region68: #{swiglu_pallas.1} parent=63 // pred_fallthru
          _
      $region64: #{swiglu_pallas.1} parent=5 // pred_fallthru
        _
    $region6: #{swiglu_pallas.1} parent=1 // loop_footer
      %s18 = sadd.s32 1, %s14
    $region7: #{swiglu_pallas.1} parent=1 // loop_footer_branch
      %13 = sbr.rel target = $region3
    $region8: #{swiglu_pallas.1} parent=1 // loop_exit
      _
    %1607 = vsyncpa [#allocation3], 1
    %s1608 = scalar_lea.sflag [#allocation3], 1
    %1609 = vsyncpa %s1608, 1

</llo_original>
